<compile_context>
chip_gen: v7x
topology: tpu7x:2x2x1
jax: 0.10.0
libtpu: 0.0.40
codegen_flags: <defaults>
</compile_context>

<pallas_src>
import jax
import jax.numpy as jnp
from jax import lax
from jax.experimental import pallas as pl
from jax.experimental.pallas import tpu as pltpu

LEAKY_SLOPE = 0.01  # F.leaky_relu default used by dl4dp's MLP


def _round_up(x, m):
    return (x + m - 1) // m * m


def _leaky_relu(x):
    # max(x, a*x) == leaky_relu(x) for 0 < a < 1 (mul+max, 2 VALU ops vs cmp+mul+select).
    return jnp.maximum(x, LEAKY_SLOPE * x)


def arc_biaffine_kernel(h_ref, whT_ref, bh_ref, wdT_ref, bd_ref, wm_ref, wb_ref, out_ref):
    """One grid step = Bt sentences.

    h_ref   : (Bt, Sr, Ep) bf16   encoder states (zero-padded)
    whT_ref : (Ep, Mp)     bf16   h_mlp weight, pre-transposed
    bh_ref  : (1, Mp)      f32    h_mlp bias
    wdT_ref : (Ep, Mp)     bf16   d_mlp weight, pre-transposed
    bd_ref  : (1, Mp)      f32    d_mlp bias
    wm_ref  : (Mp, Mp)     bf16   biaffine weight, main block  W[0, :M, :]
    wb_ref  : (1, Mp)      f32    biaffine weight, bias_x row  W[0,  M, :]
    out_ref : (Bt, Sr, Sr) f32    arc scores [dep, head]
    """
    Bt, Sr, Ep = h_ref.shape
    Mp = whT_ref.shape[1]

    # Layout-preserving collapse (Sr % 16 == 0, Ep % 128 == 0): one big row-batched matmul
    # per MLP so Bt*Sr rows stream through the MXU per weight residency.
    h2 = h_ref[...].reshape(Bt * Sr, Ep)  # bf16

    # d-branch first: arc_d -> xw -> bf16, so the f32 arc_d / xw buffers are dead before
    # arc_h is materialized (lower peak VMEM scratch / spill pressure).
    arc_d = _leaky_relu(
        jnp.dot(h2, wdT_ref[...], preferred_element_type=jnp.float32) + bd_ref[...]
    )  # (Bt*Sr, Mp) f32
    # Biaffine with bias_x=True, bias_y=False:  [arc_d, 1] @ W == arc_d @ W[:M, :] + W[M, :]
    xw = (
        jnp.dot(arc_d.astype(jnp.bfloat16), wm_ref[...], preferred_element_type=jnp.float32)
        + wb_ref[...]
    )  # (Bt*Sr, Mp) f32
    xw_b = xw.astype(jnp.bfloat16).reshape(Bt, Sr, Mp)

    arc_h = _leaky_relu(
        jnp.dot(h2, whT_ref[...], preferred_element_type=jnp.float32) + bh_ref[...]
    )  # (Bt*Sr, Mp) f32
    ah_b = arc_h.astype(jnp.bfloat16).reshape(Bt, Sr, Mp)

    # scores[b, d, h] = sum_m xw[b, d, m] * arc_h[b, h, m]   (batched, contract last dims)
    # TODO(synk): keep these two operands in f32 if parse accuracy ever regresses from the
    # extra bf16 roundings (tolerance in the test is relaxed accordingly).
    out_ref[...] = lax.dot_general(
        xw_b, ah_b, (((2,), (2,)), ((0,), (0,))), preferred_element_type=jnp.float32
    )


def _vmem_bytes(bt, sr, ep, mp):
    """Rough per-step VMEM footprint of the pipeline + in-body intermediates."""
    h_blk = 2 * bt * sr * ep * 2             # double-buffered bf16 input block
    out_blk = 2 * bt * sr * sr * 4           # double-buffered f32 output block
    weights = (2 * ep * mp + mp * mp) * 2 + 3 * mp * 4   # constant (single-buffered) operands
    inter = bt * sr * mp * (2 * 4 + 2 * 2)   # ~2 live f32 + 2 bf16 intermediates
    return h_blk + out_blk + weights + inter


def _plan_grid(B, Sr, Ep, Mp):
    """Pick (batch tile Bt, padded batch Bp, vmem_limit_bytes) for this TPU generation."""
    vmem_cap = 64 * 2**20                    # conservative default = v7x per-TC VMEM
    try:
        vmem_cap = int(pltpu.get_tpu_info().vmem_capacity_bytes)
    except Exception:
        pass
    if vmem_cap >= 100 * 2**20:              # v5e / v6e: 128 MiB physical VMEM
        target_rows, vmem_limit = 1024, 96 * 2**20
    else:                                    # v7x: 64 MiB physical -> leave headroom
        target_rows, vmem_limit = 512, 48 * 2**20

    bt = max(1, target_rows // Sr)
    if B >= 2:
        bt = min(bt, (B + 1) // 2)           # keep >= 2 grid steps so both v7x TCs get work
    bt = max(1, min(bt, B))
    budget = (vmem_limit * 3) // 4
    while bt > 1 and _vmem_bytes(bt, Sr, Ep, Mp) > budget:
        bt = (bt + 1) // 2
    return bt, _round_up(B, bt), vmem_limit


def prepare_params(params):
    """One-time weight padding / bf16 casting (hoisted out of the per-call wrapper)."""
    M, E = params["wh"].shape
    Ep, Mp = _round_up(E, 128), _round_up(M, 128)
    bf16 = jnp.bfloat16

    def pad2(x, rows, cols, dtype):
        x = jnp.asarray(x, dtype)
        return jnp.pad(x, ((0, rows - x.shape[0]), (0, cols - x.shape[1])))

    return {
        "E": E, "M": M, "Ep": Ep, "Mp": Mp,
        "whT": pad2(params["wh"].T, Ep, Mp, bf16),
        "wdT": pad2(params["wd"].T, Ep, Mp, bf16),
        "wm": pad2(params["w_biaffine"][0, :M, :], Mp, Mp, bf16),
        "bh": pad2(params["bh"][None, :], 1, Mp, jnp.float32),
        "bd": pad2(params["bd"][None, :], 1, Mp, jnp.float32),
        "wb": pad2(params["w_biaffine"][0, M, :][None, :], 1, Mp, jnp.float32),
    }


def _make_specs(Bt, Sr, Ep, Mp, single_buffer_weights):
    if single_buffer_weights:
        # Constant index_map -> fetched once; single buffer avoids 2x VMEM for the weights.
        const_kw = {"pipeline_mode": pl.Buffered(1)}
    else:
        const_kw = {}

    def const(shape):
        return pl.BlockSpec(shape, lambda b: (0,) * len(shape), **const_kw)

    in_specs = [
        pl.BlockSpec((Bt, Sr, Ep), lambda b: (b, 0, 0)),
        const((Ep, Mp)), const((1, Mp)),
        const((Ep, Mp)), const((1, Mp)),
        const((Mp, Mp)), const((1, Mp)),
    ]
    out_specs = pl.BlockSpec((Bt, Sr, Sr), lambda b: (b, 0, 0))
    return in_specs, out_specs


def arc_biaffine_scores(h, prepped):
    """Pallas-computed biaffine arc scores: [B, S, S] (f32)."""
    B, S, E = h.shape
    assert E == prepped["E"], (E, prepped["E"])
    Ep, Mp = prepped["Ep"], prepped["Mp"]

    # Only the lane / contraction dims (E, M) need 128; the sequence axis only needs the
    # bf16 sublane pack (16).  Padded rows pick up the biases (nonzero garbage) and padded
    # batch entries are all-garbage, but both are sliced off below.
    Sr = _round_up(S, 16)
    Bt, Bp, vmem_limit = _plan_grid(B, Sr, Ep, Mp)

    h_p = jnp.pad(h.astype(jnp.bfloat16), ((0, Bp - B), (0, Sr - S), (0, Ep - E)))
    grid = (Bp // Bt,)
    args = (h_p, prepped["whT"], prepped["bh"], prepped["wdT"], prepped["bd"],
            prepped["wm"], prepped["wb"])

    last_err = None
    for single_buffer in (True, False):
        try:
            in_specs, out_specs = _make_specs(Bt, Sr, Ep, Mp, single_buffer)
            scores_p = pl.pallas_call(
                arc_biaffine_kernel,
                out_shape=jax.ShapeDtypeStruct((Bp, Sr, Sr), jnp.float32),
                grid=grid,
                in_specs=in_specs,
                out_specs=out_specs,
                compiler_params=pltpu.CompilerParams(
                    dimension_semantics=("parallel",),
                    vmem_limit_bytes=vmem_limit,
                ),
            )(*args)
            return scores_p[:B, :S, :S]
        except Exception as e:  # pl.Buffered(1) unsupported -> default double-buffering
            last_err = e
    raise last_err


def arc_biaffine_forward(h, indexes, prepped):
    scores = arc_biaffine_scores(h, prepped)            # [B, S, S]
    # arc_scores[indexes[0, :], indexes[1, :], :] — plain-JAX row gather.
    # TODO(synk): fuse this gather (scalar-prefetched indexes) and/or emit bf16 scores to
    # shrink the f32 writeback on v5e; in the parser T ~= B*S so the saving is modest.
    return scores[indexes[0, :], indexes[1, :], :]      # [T, S]


def init_params(key, encoder_dim, mlp_dim):
    k = jax.random.split(key, 6)
    scale_lin = 1.0 / jnp.sqrt(encoder_dim)
    scale_bi = 1.0 / jnp.sqrt(mlp_dim)
    return {
        "wh": jax.random.normal(k[0], (mlp_dim, encoder_dim), jnp.float32) * scale_lin,
        "bh": jax.random.normal(k[1], (mlp_dim,), jnp.float32) * 0.01,
        "wd": jax.random.normal(k[2], (mlp_dim, encoder_dim), jnp.float32) * scale_lin,
        "bd": jax.random.normal(k[3], (mlp_dim,), jnp.float32) * 0.01,
        # Biaffine(mlp_dim, 1, bias_x=True, bias_y=False) -> (1, mlp_dim + 1, mlp_dim)
        "w_biaffine": jax.random.normal(k[4], (1, mlp_dim + 1, mlp_dim), jnp.float32) * scale_bi,
    }


def reference_forward(h, indexes, params):
    """Pure-JAX f32 reference mirroring the PyTorch forward."""
    arc_h = jax.nn.leaky_relu(h @ params["wh"].T + params["bh"], LEAKY_SLOPE)
    arc_d = jax.nn.leaky_relu(h @ params["wd"].T + params["bd"], LEAKY_SLOPE)
    x = jnp.concatenate([arc_d, jnp.ones(arc_d.shape[:-1] + (1,), arc_d.dtype)], -1)
    s = jnp.einsum("bxi,oij,byj->boxy", x, params["w_biaffine"], arc_h)[:, 0]  # [B,S,S]
    return s[indexes[0, :], indexes[1, :], :]


def _run_case(key, B, S, E, M, T):
    kh, ki, kp = jax.random.split(key, 3)
    h = jax.random.normal(kh, (B, S, E), jnp.float32)
    batch_idx = jax.random.randint(ki, (T,), 0, B)
    tok_idx = jax.random.randint(jax.random.fold_in(ki, 1), (T,), 0, S)
    indexes = jnp.stack([batch_idx, tok_idx], axis=0).astype(jnp.int32)  # [2, T]

    params = init_params(kp, E, M)
    prepped = prepare_params(params)

    out = jax.block_until_ready(arc_biaffine_forward(h, indexes, prepped))
    ref = reference_forward(h, indexes, params)
    assert out.shape == (T, S), out.shape

    # bf16 MXU operands (f32 accumulation): magnitude-normalized tolerance.
    max_err = float(jnp.max(jnp.abs(out - ref)))
    scale = float(jnp.max(jnp.abs(ref))) + 1e-6
    rel = max_err / scale
    assert rel < 5e-2, f"case B={B} S={S} E={E} M={M}: rel max err {rel:.4f}"


if __name__ == "__main__":
    key = jax.random.PRNGKey(0)
    k1, k2 = jax.random.split(key)
    # Small canonical case.
    _run_case(k1, B=2, S=8, E=32, M=32, T=10)
    # Padded / multi-tile case: non-divisor B, S/E/M not multiples of 128, grid > 1 step.
    _run_case(k2, B=5, S=37, E=96, M=80, T=60)
    print("KERNEL_OK")
</pallas_src>

<mosaic_0001>
module attributes {stable_mosaic.version = 11 : i64} {
  func.func @arc_biaffine_kernel(%arg0: i32, %arg1: memref<1x16x128xbf16, #tpu.memory_space<vmem>>, %arg2: memref<128x128xbf16, #tpu.memory_space<vmem>>, %arg3: memref<1x128xf32, #tpu.memory_space<vmem>>, %arg4: memref<128x128xbf16, #tpu.memory_space<vmem>>, %arg5: memref<1x128xf32, #tpu.memory_space<vmem>>, %arg6: memref<128x128xbf16, #tpu.memory_space<vmem>>, %arg7: memref<1x128xf32, #tpu.memory_space<vmem>>, %arg8: memref<1x16x16xf32, #tpu.memory_space<vmem>>) attributes {dimension_semantics = [#tpu.dimension_semantics<parallel>], iteration_bounds = array<i64: 2>, scalar_prefetch = 0 : i64, scratch_operands = 0 : i64, tpu.core_type = #tpu.core_type<tc>, window_params = [{transform_indices = @transform_0, window_bounds = array<i64: 1, 16, 128>}, {pipeline_mode = #tpu.pipeline_mode<synchronous>, transform_indices = @transform_1, window_bounds = array<i64: 128, 128>}, {pipeline_mode = #tpu.pipeline_mode<synchronous>, transform_indices = @transform_2, window_bounds = array<i64: 1, 128>}, {pipeline_mode = #tpu.pipeline_mode<synchronous>, transform_indices = @transform_3, window_bounds = array<i64: 128, 128>}, {pipeline_mode = #tpu.pipeline_mode<synchronous>, transform_indices = @transform_4, window_bounds = array<i64: 1, 128>}, {pipeline_mode = #tpu.pipeline_mode<synchronous>, transform_indices = @transform_5, window_bounds = array<i64: 128, 128>}, {pipeline_mode = #tpu.pipeline_mode<synchronous>, transform_indices = @transform_6, window_bounds = array<i64: 1, 128>}, {transform_indices = @transform_7, window_bounds = array<i64: 1, 16, 16>}]} {
    %c0 = arith.constant 0 : index
    %c0_0 = arith.constant 0 : index
    %c0_1 = arith.constant 0 : index
    %0 = vector.load %arg1[%c0, %c0_0, %c0_1] : memref<1x16x128xbf16, #tpu.memory_space<vmem>>, vector<1x16x128xbf16>
    %1 = vector.shape_cast %0 : vector<1x16x128xbf16> to vector<16x128xbf16>
    %c0_2 = arith.constant 0 : index
    %c0_3 = arith.constant 0 : index
    %2 = vector.load %arg4[%c0_2, %c0_3] : memref<128x128xbf16, #tpu.memory_space<vmem>>, vector<128x128xbf16>
    %cst = arith.constant dense<0.000000e+00> : vector<16x128xf32>
    %3 = tpu.matmul %1, %2, %cst {dimension_numbers = #tpu.dot_dimension_numbers<[1], [0], [0], [1], [0, 0, 1, 1], [], []>} : vector<16x128xbf16>, vector<128x128xbf16>, vector<16x128xf32> -> vector<16x128xf32>
    %c0_4 = arith.constant 0 : index
    %c0_5 = arith.constant 0 : index
    %4 = vector.load %arg5[%c0_4, %c0_5] : memref<1x128xf32, #tpu.memory_space<vmem>>, vector<1x128xf32>
    %5 = vector.broadcast %4 : vector<1x128xf32> to vector<16x128xf32>
    %6 = arith.addf %3, %5 : vector<16x128xf32>
    %cst_6 = arith.constant 0.00999999977 : f32
    %7 = vector.broadcast %cst_6 : f32 to vector<16x128xf32>
    %8 = arith.mulf %7, %6 : vector<16x128xf32>
    %9 = arith.maximumf %6, %8 : vector<16x128xf32>
    %10 = arith.truncf %9 : vector<16x128xf32> to vector<16x128xbf16>
    %c0_7 = arith.constant 0 : index
    %c0_8 = arith.constant 0 : index
    %11 = vector.load %arg6[%c0_7, %c0_8] : memref<128x128xbf16, #tpu.memory_space<vmem>>, vector<128x128xbf16>
    %cst_9 = arith.constant dense<0.000000e+00> : vector<16x128xf32>
    %12 = tpu.matmul %10, %11, %cst_9 {dimension_numbers = #tpu.dot_dimension_numbers<[1], [0], [0], [1], [0, 0, 1, 1], [], []>} : vector<16x128xbf16>, vector<128x128xbf16>, vector<16x128xf32> -> vector<16x128xf32>
    %c0_10 = arith.constant 0 : index
    %c0_11 = arith.constant 0 : index
    %13 = vector.load %arg7[%c0_10, %c0_11] : memref<1x128xf32, #tpu.memory_space<vmem>>, vector<1x128xf32>
    %14 = vector.broadcast %13 : vector<1x128xf32> to vector<16x128xf32>
    %15 = arith.addf %12, %14 : vector<16x128xf32>
    %16 = arith.truncf %15 : vector<16x128xf32> to vector<16x128xbf16>
    %17 = vector.shape_cast %16 : vector<16x128xbf16> to vector<1x16x128xbf16>
    %c0_12 = arith.constant 0 : index
    %c0_13 = arith.constant 0 : index
    %18 = vector.load %arg2[%c0_12, %c0_13] : memref<128x128xbf16, #tpu.memory_space<vmem>>, vector<128x128xbf16>
    %cst_14 = arith.constant dense<0.000000e+00> : vector<16x128xf32>
    %19 = tpu.matmul %1, %18, %cst_14 {dimension_numbers = #tpu.dot_dimension_numbers<[1], [0], [0], [1], [0, 0, 1, 1], [], []>} : vector<16x128xbf16>, vector<128x128xbf16>, vector<16x128xf32> -> vector<16x128xf32>
    %c0_15 = arith.constant 0 : index
    %c0_16 = arith.constant 0 : index
    %20 = vector.load %arg3[%c0_15, %c0_16] : memref<1x128xf32, #tpu.memory_space<vmem>>, vector<1x128xf32>
    %21 = vector.broadcast %20 : vector<1x128xf32> to vector<16x128xf32>
    %22 = arith.addf %19, %21 : vector<16x128xf32>
    %cst_17 = arith.constant 0.00999999977 : f32
    %23 = vector.broadcast %cst_17 : f32 to vector<16x128xf32>
    %24 = arith.mulf %23, %22 : vector<16x128xf32>
    %25 = arith.maximumf %22, %24 : vector<16x128xf32>
    %26 = arith.truncf %25 : vector<16x128xf32> to vector<16x128xbf16>
    %27 = vector.shape_cast %26 : vector<16x128xbf16> to vector<1x16x128xbf16>
    %cst_18 = arith.constant dense<0.000000e+00> : vector<1x16x16xf32>
    %28 = tpu.matmul %17, %27, %cst_18 {dimension_numbers = #tpu.dot_dimension_numbers<[2], [2], [1], [1], [0, 0, 0, 1, 1, 1], [0], [0]>} : vector<1x16x128xbf16>, vector<1x16x128xbf16>, vector<1x16x16xf32> -> vector<1x16x16xf32>
    %c0_19 = arith.constant 0 : index
    %c0_20 = arith.constant 0 : index
    %c0_21 = arith.constant 0 : index
    %29 = vector.load %arg8[%c0_19, %c0_20, %c0_21] : memref<1x16x16xf32, #tpu.memory_space<vmem>>, vector<1x16x16xf32>
    tpu.vector_store %arg8[%c0_19, %c0_20, %c0_21], %28 {strides = array<i32>} : memref<1x16x16xf32, #tpu.memory_space<vmem>>, vector<1x16x16xf32>,
    return
  }
  func.func @transform_0(%arg0: i32) -> (i32, i32, i32) {
    %c0_i32 = arith.constant 0 : i32
    %c0_i32_0 = arith.constant 0 : i32
    %c0_i32_1 = arith.constant 0 : i32
    return %arg0, %c0_i32, %c0_i32_0 : i32, i32, i32
  }
  func.func @transform_1(%arg0: i32) -> (i32, i32) {
    %c0_i32 = arith.constant 0 : i32
    %c0_i32_0 = arith.constant 0 : i32
    %c0_i32_1 = arith.constant 0 : i32
    return %c0_i32, %c0_i32_0 : i32, i32
  }
  func.func @transform_2(%arg0: i32) -> (i32, i32) {
    %c0_i32 = arith.constant 0 : i32
    %c0_i32_0 = arith.constant 0 : i32
    %c0_i32_1 = arith.constant 0 : i32
    return %c0_i32, %c0_i32_0 : i32, i32
  }
  func.func @transform_3(%arg0: i32) -> (i32, i32) {
    %c0_i32 = arith.constant 0 : i32
    %c0_i32_0 = arith.constant 0 : i32
    %c0_i32_1 = arith.constant 0 : i32
    return %c0_i32, %c0_i32_0 : i32, i32
  }
  func.func @transform_4(%arg0: i32) -> (i32, i32) {
    %c0_i32 = arith.constant 0 : i32
    %c0_i32_0 = arith.constant 0 : i32
    %c0_i32_1 = arith.constant 0 : i32
    return %c0_i32, %c0_i32_0 : i32, i32
  }
  func.func @transform_5(%arg0: i32) -> (i32, i32) {
    %c0_i32 = arith.constant 0 : i32
    %c0_i32_0 = arith.constant 0 : i32
    %c0_i32_1 = arith.constant 0 : i32
    return %c0_i32, %c0_i32_0 : i32, i32
  }
  func.func @transform_6(%arg0: i32) -> (i32, i32) {
    %c0_i32 = arith.constant 0 : i32
    %c0_i32_0 = arith.constant 0 : i32
    %c0_i32_1 = arith.constant 0 : i32
    return %c0_i32, %c0_i32_0 : i32, i32
  }
  func.func @transform_7(%arg0: i32) -> (i32, i32, i32) {
    %c0_i32 = arith.constant 0 : i32
    %c0_i32_0 = arith.constant 0 : i32
    %c0_i32_1 = arith.constant 0 : i32
    return %arg0, %c0_i32, %c0_i32_0 : i32, i32, i32
  }
}

module attributes {stable_mosaic.version = 11 : i64} {
  func.func @arc_biaffine_kernel(%arg0: i32, %arg1: memref<1x16x128xbf16, #tpu.memory_space<vmem>>, %arg2: memref<128x128xbf16, #tpu.memory_space<vmem>>, %arg3: memref<1x128xf32, #tpu.memory_space<vmem>>, %arg4: memref<128x128xbf16, #tpu.memory_space<vmem>>, %arg5: memref<1x128xf32, #tpu.memory_space<vmem>>, %arg6: memref<128x128xbf16, #tpu.memory_space<vmem>>, %arg7: memref<1x128xf32, #tpu.memory_space<vmem>>, %arg8: memref<1x16x16xf32, #tpu.memory_space<vmem>>) attributes {dimension_semantics = [#tpu.dimension_semantics<parallel>], iteration_bounds = array<i64: 2>, scalar_prefetch = 0 : i64, scratch_operands = 0 : i64, tpu.core_type = #tpu.core_type<tc>, window_params = [{transform_indices = @transform_0, window_bounds = array<i64: 1, 16, 128>}, {pipeline_mode = #tpu.pipeline_mode<synchronous>, transform_indices = @transform_1, window_bounds = array<i64: 128, 128>}, {pipeline_mode = #tpu.pipeline_mode<synchronous>, transform_indices = @transform_2, window_bounds = array<i64: 1, 128>}, {pipeline_mode = #tpu.pipeline_mode<synchronous>, transform_indices = @transform_3, window_bounds = array<i64: 128, 128>}, {pipeline_mode = #tpu.pipeline_mode<synchronous>, transform_indices = @transform_4, window_bounds = array<i64: 1, 128>}, {pipeline_mode = #tpu.pipeline_mode<synchronous>, transform_indices = @transform_5, window_bounds = array<i64: 128, 128>}, {pipeline_mode = #tpu.pipeline_mode<synchronous>, transform_indices = @transform_6, window_bounds = array<i64: 1, 128>}, {transform_indices = @transform_7, window_bounds = array<i64: 1, 16, 16>}]} {
    %c0 = arith.constant 0 : index
    %c0_0 = arith.constant 0 : index
    %c0_1 = arith.constant 0 : index
    %0 = vector.load %arg1[%c0, %c0_0, %c0_1] : memref<1x16x128xbf16, #tpu.memory_space<vmem>>, vector<1x16x128xbf16>
    %1 = vector.shape_cast %0 : vector<1x16x128xbf16> to vector<16x128xbf16>
    %c0_2 = arith.constant 0 : index
    %c0_3 = arith.constant 0 : index
    %2 = vector.load %arg4[%c0_2, %c0_3] : memref<128x128xbf16, #tpu.memory_space<vmem>>, vector<128x128xbf16>
    %cst = arith.constant dense<0.000000e+00> : vector<16x128xf32>
    %3 = tpu.matmul %1, %2, %cst {dimension_numbers = #tpu.dot_dimension_numbers<[1], [0], [0], [1], [0, 0, 1, 1], [], []>} : vector<16x128xbf16>, vector<128x128xbf16>, vector<16x128xf32> -> vector<16x128xf32>
    %c0_4 = arith.constant 0 : index
    %c0_5 = arith.constant 0 : index
    %4 = vector.load %arg5[%c0_4, %c0_5] : memref<1x128xf32, #tpu.memory_space<vmem>>, vector<1x128xf32>
    %5 = vector.broadcast %4 : vector<1x128xf32> to vector<16x128xf32>
    %6 = arith.addf %3, %5 : vector<16x128xf32>
    %cst_6 = arith.constant 0.00999999977 : f32
    %7 = vector.broadcast %cst_6 : f32 to vector<16x128xf32>
    %8 = arith.mulf %7, %6 : vector<16x128xf32>
    %9 = arith.maximumf %6, %8 : vector<16x128xf32>
    %10 = arith.truncf %9 : vector<16x128xf32> to vector<16x128xbf16>
    %c0_7 = arith.constant 0 : index
    %c0_8 = arith.constant 0 : index
    %11 = vector.load %arg6[%c0_7, %c0_8] : memref<128x128xbf16, #tpu.memory_space<vmem>>, vector<128x128xbf16>
    %cst_9 = arith.constant dense<0.000000e+00> : vector<16x128xf32>
    %12 = tpu.matmul %10, %11, %cst_9 {dimension_numbers = #tpu.dot_dimension_numbers<[1], [0], [0], [1], [0, 0, 1, 1], [], []>} : vector<16x128xbf16>, vector<128x128xbf16>, vector<16x128xf32> -> vector<16x128xf32>
    %c0_10 = arith.constant 0 : index
    %c0_11 = arith.constant 0 : index
    %13 = vector.load %arg7[%c0_10, %c0_11] : memref<1x128xf32, #tpu.memory_space<vmem>>, vector<1x128xf32>
    %14 = vector.broadcast %13 : vector<1x128xf32> to vector<16x128xf32>
    %15 = arith.addf %12, %14 : vector<16x128xf32>
    %16 = arith.truncf %15 : vector<16x128xf32> to vector<16x128xbf16>
    %17 = vector.shape_cast %16 : vector<16x128xbf16> to vector<1x16x128xbf16>
    %c0_12 = arith.constant 0 : index
    %c0_13 = arith.constant 0 : index
    %18 = vector.load %arg2[%c0_12, %c0_13] : memref<128x128xbf16, #tpu.memory_space<vmem>>, vector<128x128xbf16>
    %cst_14 = arith.constant dense<0.000000e+00> : vector<16x128xf32>
    %19 = tpu.matmul %1, %18, %cst_14 {dimension_numbers = #tpu.dot_dimension_numbers<[1], [0], [0], [1], [0, 0, 1, 1], [], []>} : vector<16x128xbf16>, vector<128x128xbf16>, vector<16x128xf32> -> vector<16x128xf32>
    %c0_15 = arith.constant 0 : index
    %c0_16 = arith.constant 0 : index
    %20 = vector.load %arg3[%c0_15, %c0_16] : memref<1x128xf32, #tpu.memory_space<vmem>>, vector<1x128xf32>
    %21 = vector.broadcast %20 : vector<1x128xf32> to vector<16x128xf32>
    %22 = arith.addf %19, %21 : vector<16x128xf32>
    %cst_17 = arith.constant 0.00999999977 : f32
    %23 = vector.broadcast %cst_17 : f32 to vector<16x128xf32>
    %24 = arith.mulf %23, %22 : vector<16x128xf32>
    %25 = arith.maximumf %22, %24 : vector<16x128xf32>
    %26 = arith.truncf %25 : vector<16x128xf32> to vector<16x128xbf16>
    %27 = vector.shape_cast %26 : vector<16x128xbf16> to vector<1x16x128xbf16>
    %cst_18 = arith.constant dense<0.000000e+00> : vector<1x16x16xf32>
    %28 = tpu.matmul %17, %27, %cst_18 {dimension_numbers = #tpu.dot_dimension_numbers<[2], [2], [1], [1], [0, 0, 0, 1, 1, 1], [0], [0]>} : vector<1x16x128xbf16>, vector<1x16x128xbf16>, vector<1x16x16xf32> -> vector<1x16x16xf32>
    %c0_19 = arith.constant 0 : index
    %c0_20 = arith.constant 0 : index
    %c0_21 = arith.constant 0 : index
    %29 = vector.load %arg8[%c0_19, %c0_20, %c0_21] : memref<1x16x16xf32, #tpu.memory_space<vmem>>, vector<1x16x16xf32>
    tpu.vector_store %arg8[%c0_19, %c0_20, %c0_21], %28 {strides = array<i32>} : memref<1x16x16xf32, #tpu.memory_space<vmem>>, vector<1x16x16xf32>,
    return
  }
  func.func @transform_0(%arg0: i32) -> (i32, i32, i32) {
    %c0_i32 = arith.constant 0 : i32
    %c0_i32_0 = arith.constant 0 : i32
    %c0_i32_1 = arith.constant 0 : i32
    return %arg0, %c0_i32, %c0_i32_0 : i32, i32, i32
  }
  func.func @transform_1(%arg0: i32) -> (i32, i32) {
    %c0_i32 = arith.constant 0 : i32
    %c0_i32_0 = arith.constant 0 : i32
    %c0_i32_1 = arith.constant 0 : i32
    return %c0_i32, %c0_i32_0 : i32, i32
  }
  func.func @transform_2(%arg0: i32) -> (i32, i32) {
    %c0_i32 = arith.constant 0 : i32
    %c0_i32_0 = arith.constant 0 : i32
    %c0_i32_1 = arith.constant 0 : i32
    return %c0_i32, %c0_i32_0 : i32, i32
  }
  func.func @transform_3(%arg0: i32) -> (i32, i32) {
    %c0_i32 = arith.constant 0 : i32
    %c0_i32_0 = arith.constant 0 : i32
    %c0_i32_1 = arith.constant 0 : i32
    return %c0_i32, %c0_i32_0 : i32, i32
  }
  func.func @transform_4(%arg0: i32) -> (i32, i32) {
    %c0_i32 = arith.constant 0 : i32
    %c0_i32_0 = arith.constant 0 : i32
    %c0_i32_1 = arith.constant 0 : i32
    return %c0_i32, %c0_i32_0 : i32, i32
  }
  func.func @transform_5(%arg0: i32) -> (i32, i32) {
    %c0_i32 = arith.constant 0 : i32
    %c0_i32_0 = arith.constant 0 : i32
    %c0_i32_1 = arith.constant 0 : i32
    return %c0_i32, %c0_i32_0 : i32, i32
  }
  func.func @transform_6(%arg0: i32) -> (i32, i32) {
    %c0_i32 = arith.constant 0 : i32
    %c0_i32_0 = arith.constant 0 : i32
    %c0_i32_1 = arith.constant 0 : i32
    return %c0_i32, %c0_i32_0 : i32, i32
  }
  func.func @transform_7(%arg0: i32) -> (i32, i32, i32) {
    %c0_i32 = arith.constant 0 : i32
    %c0_i32_0 = arith.constant 0 : i32
    %c0_i32_1 = arith.constant 0 : i32
    return %arg0, %c0_i32, %c0_i32_0 : i32, i32, i32
  }
}

</mosaic_0001>

<llo_original>
// kernel: tpu_custom_call.1
$region0: #{tpu_custom_call.1}
  #allocation0 [shape = 'u32[]', space=smem, size = 0x4, offset = 0x4, fixed_abs, tag = 'smem constant byte address 0x4 - core index']
  #allocation1 [shape = 'u32[144,128]{1,0:T(1,128)}', space=vmem, size = 0x12000, scoped, tag = 'internal scratch']
  %s0 = inlined_call_operand.hbm [shape: bf16[2,16,128], index: 0, kind: input, shape index: {}]
  %s1 = inlined_call_operand.hbm [shape: bf16[128,128], index: 1, kind: input, shape index: {}]
  %s2 = inlined_call_operand.vmem [shape: f32[1,128], index: 2, kind: input, shape index: {}]
  %s3 = inlined_call_operand.hbm [shape: bf16[128,128], index: 3, kind: input, shape index: {}]
  %s4 = inlined_call_operand.vmem [shape: f32[1,128], index: 4, kind: input, shape index: {}]
  %s5 = inlined_call_operand.hbm [shape: bf16[128,128], index: 5, kind: input, shape index: {}]
  %s6 = inlined_call_operand.vmem [shape: f32[1,128], index: 6, kind: input, shape index: {}]
  %s7 = inlined_call_operand.hbm [shape: f32[2,16,16], index: 7, kind: output, shape index: {}]
  %s8 = sld [smem:[#allocation0]]
  $region77: #{tpu_custom_call.1} parent=0
    _
  %s10 = ssub.s32 1, %s8
  %s11 = scalar_select 0, %s10, %s8
  $region1: #{tpu_custom_call.1} parent=0
    #allocation2 [shape = 'u8[8192]{0}', space=vmem, size = 0x2000, scoped, tag = 'input window, operand 0']
    #allocation3 [shape = 's32[2]{0}', space=sflag, size = 0x8, scoped, tag = 'scoped memory for tpu_custom_call.1']
    #allocation4 [shape = 's32[2]{0}', space=sflag, size = 0x8, scoped, tag = 'scoped memory for tpu_custom_call.1']
    #allocation5 [shape = 'u8[32768]{0}', space=vmem, size = 0x8000, scoped, tag = 'input window, operand 1, single buffered']
    #allocation6 [shape = 's32[1]{0}', space=sflag, size = 0x4, scoped, tag = 'scoped memory for tpu_custom_call.1']
    #allocation7 [shape = 'u8[32768]{0}', space=vmem, size = 0x8000, scoped, tag = 'input window, operand 3, single buffered']
    #allocation8 [shape = 'u8[32768]{0}', space=vmem, size = 0x8000, scoped, tag = 'input window, operand 5, single buffered']
    #allocation9 [shape = 's32[1]{0}', space=sflag, size = 0x4, scoped, tag = 'scoped memory for tpu_custom_call.1']
    #allocation10 [shape = 'u8[16384]{0}', space=vmem, size = 0x4000, scoped, tag = 'output window, operand 0']
    %12 = vsyncpa [#allocation3], 0
    %s13 = scalar_lea.sflag [#allocation3], 1
    %14 = vsyncpa %s13, 0
    %15 = vsyncpa [#allocation6], 0
    %16 = vsyncpa [#allocation9], 0
    %17 = vsyncpa [#allocation4], 0
    %s18 = scalar_lea.sflag [#allocation4], 1
    %19 = vsyncpa %s18, 0
    loop: start=0, step=1, limit=4
    $region2: #{tpu_custom_call.1} parent=1 // loop_pre_header
      _
    $region3: #{tpu_custom_call.1} parent=1 // loop_header
      %s21 = sphi 0, %s25
      %p22 = scmp.ge.s32.totalorder %s21, 4
      %s31 = sphi 0, %s33
      %s34 = sphi 0, %s31
      %s35 = sphi 0, %s34
      %s51 = sphi 0, %s35
      %s55 = sphi 0, %s55
      %s57 = sphi 0, %s55
      %s58 = sphi 0, %s57
      %s72 = sphi 0, %s58
      %s76 = sphi 0, %s76
      %s78 = sphi 0, %s76
      %s79 = sphi 0, %s78
      %s93 = sphi 0, %s79
      %s97 = sphi 0, %s97
      %s99 = sphi 0, %s97
      %s100 = sphi 0, %s99
      %s114 = sphi 0, %s100
      %s118 = sphi 0, %s118
      %s120 = sphi 0, %s118
      %s121 = sphi 0, %s120
      %s135 = sphi 0, %s121
      %s139 = sphi 0, %s139
      %s141 = sphi 0, %s139
      %s142 = sphi 0, %s141
      %s156 = sphi 0, %s142
      %s160 = sphi 0, %s160
      %s162 = sphi 0, %s160
      %s163 = sphi 0, %s162
      %s177 = sphi 0, %s163
      %s183 = sphi 0, %s185
      %s186 = sphi 0, %s183
      %s187 = sphi 0, %s186
      %s203 = sphi 0, %s187
    $region4: #{tpu_custom_call.1} parent=1 // loop_header_branch
      %24 = sbr.rel (%p22) target = $region8
    $region5: #{tpu_custom_call.1} parent=1 // loop_body
      %s26 = ssub.s32 %s21, 1
      %s27 = ssub.s32 %s21, 2
      %s28 = sadd.s32 %s21, 1
      %s29 = ssub.s32 %s21, %s28
      %p30 = scmp.eq.s32.totalorder %s29, 0
      %s32 = sadd.s32 %s31, 1
      %s33 = scalar_select %p30, %s31, %s32
      %p36 = pneg %p30
      %p37 = scmp.eq.s32.totalorder %s21, 1
      %p38 = por %p36, %p37
      %p39 = scmp.ne.s32.totalorder %s31, %s34
      %p40 = scmp.eq.s32.totalorder %s21, 0
      %p41 = por %p39, %p40
      %p42 = scmp.ne.s32.totalorder %s31, %s34
      %p43 = scmp.eq.s32.totalorder %s26, 1
      %p44 = por %p42, %p43
      %p45 = scmp.ne.s32.totalorder %s34, %s35
      %p46 = scmp.eq.s32.totalorder %s26, 0
      %p47 = por %p45, %p46
      %p48 = scmp.ne.s32.totalorder %s34, %s35
      %p49 = scmp.eq.s32.totalorder %s27, 1
      %p50 = por %p48, %p49
      %p52 = scmp.ne.s32.totalorder %s35, %s51
      %p53 = scmp.eq.s32.totalorder %s27, 0
      %p54 = por %p52, %p53
      %s56 = sadd.s32 %s55, 1
      %p59 = scmp.eq.s32.totalorder %s21, 1
      %p60 = scmp.ne.s32.totalorder %s55, %s57
      %p61 = scmp.eq.s32.totalorder %s21, 0
      %p62 = por %p60, %p61
      %p63 = scmp.ne.s32.totalorder %s55, %s57
      %p64 = scmp.eq.s32.totalorder %s26, 1
      %p65 = por %p63, %p64
      %p66 = scmp.ne.s32.totalorder %s57, %s58
      %p67 = scmp.eq.s32.totalorder %s26, 0
      %p68 = por %p66, %p67
      %p69 = scmp.ne.s32.totalorder %s57, %s58
      %p70 = scmp.eq.s32.totalorder %s27, 1
      %p71 = por %p69, %p70
      %p73 = scmp.ne.s32.totalorder %s58, %s72
      %p74 = scmp.eq.s32.totalorder %s27, 0
      %p75 = por %p73, %p74
      %s77 = sadd.s32 %s76, 1
      %p80 = scmp.eq.s32.totalorder %s21, 1
      %p81 = scmp.ne.s32.totalorder %s76, %s78
      %p82 = scmp.eq.s32.totalorder %s21, 0
      %p83 = por %p81, %p82
      %p84 = scmp.ne.s32.totalorder %s76, %s78
      %p85 = scmp.eq.s32.totalorder %s26, 1
      %p86 = por %p84, %p85
      %p87 = scmp.ne.s32.totalorder %s78, %s79
      %p88 = scmp.eq.s32.totalorder %s26, 0
      %p89 = por %p87, %p88
      %p90 = scmp.ne.s32.totalorder %s78, %s79
      %p91 = scmp.eq.s32.totalorder %s27, 1
      %p92 = por %p90, %p91
      %p94 = scmp.ne.s32.totalorder %s79, %s93
      %p95 = scmp.eq.s32.totalorder %s27, 0
      %p96 = por %p94, %p95
      %s98 = sadd.s32 %s97, 1
      %p101 = scmp.eq.s32.totalorder %s21, 1
      %p102 = scmp.ne.s32.totalorder %s97, %s99
      %p103 = scmp.eq.s32.totalorder %s21, 0
      %p104 = por %p102, %p103
      %p105 = scmp.ne.s32.totalorder %s97, %s99
      %p106 = scmp.eq.s32.totalorder %s26, 1
      %p107 = por %p105, %p106
      %p108 = scmp.ne.s32.totalorder %s99, %s100
      %p109 = scmp.eq.s32.totalorder %s26, 0
      %p110 = por %p108, %p109
      %p111 = scmp.ne.s32.totalorder %s99, %s100
      %p112 = scmp.eq.s32.totalorder %s27, 1
      %p113 = por %p111, %p112
      %p115 = scmp.ne.s32.totalorder %s100, %s114
      %p116 = scmp.eq.s32.totalorder %s27, 0
      %p117 = por %p115, %p116
      %s119 = sadd.s32 %s118, 1
      %p122 = scmp.eq.s32.totalorder %s21, 1
      %p123 = scmp.ne.s32.totalorder %s118, %s120
      %p124 = scmp.eq.s32.totalorder %s21, 0
      %p125 = por %p123, %p124
      %p126 = scmp.ne.s32.totalorder %s118, %s120
      %p127 = scmp.eq.s32.totalorder %s26, 1
      %p128 = por %p126, %p127
      %p129 = scmp.ne.s32.totalorder %s120, %s121
      %p130 = scmp.eq.s32.totalorder %s26, 0
      %p131 = por %p129, %p130
      %p132 = scmp.ne.s32.totalorder %s120, %s121
      %p133 = scmp.eq.s32.totalorder %s27, 1
      %p134 = por %p132, %p133
      %p136 = scmp.ne.s32.totalorder %s121, %s135
      %p137 = scmp.eq.s32.totalorder %s27, 0
      %p138 = por %p136, %p137
      %s140 = sadd.s32 %s139, 1
      %p143 = scmp.eq.s32.totalorder %s21, 1
      %p144 = scmp.ne.s32.totalorder %s139, %s141
      %p145 = scmp.eq.s32.totalorder %s21, 0
      %p146 = por %p144, %p145
      %p147 = scmp.ne.s32.totalorder %s139, %s141
      %p148 = scmp.eq.s32.totalorder %s26, 1
      %p149 = por %p147, %p148
      %p150 = scmp.ne.s32.totalorder %s141, %s142
      %p151 = scmp.eq.s32.totalorder %s26, 0
      %p152 = por %p150, %p151
      %p153 = scmp.ne.s32.totalorder %s141, %s142
      %p154 = scmp.eq.s32.totalorder %s27, 1
      %p155 = por %p153, %p154
      %p157 = scmp.ne.s32.totalorder %s142, %s156
      %p158 = scmp.eq.s32.totalorder %s27, 0
      %p159 = por %p157, %p158
      %s161 = sadd.s32 %s160, 1
      %p164 = scmp.eq.s32.totalorder %s21, 1
      %p165 = scmp.ne.s32.totalorder %s160, %s162
      %p166 = scmp.eq.s32.totalorder %s21, 0
      %p167 = por %p165, %p166
      %p168 = scmp.ne.s32.totalorder %s160, %s162
      %p169 = scmp.eq.s32.totalorder %s26, 1
      %p170 = por %p168, %p169
      %p171 = scmp.ne.s32.totalorder %s162, %s163
      %p172 = scmp.eq.s32.totalorder %s26, 0
      %p173 = por %p171, %p172
      %p174 = scmp.ne.s32.totalorder %s162, %s163
      %p175 = scmp.eq.s32.totalorder %s27, 1
      %p176 = por %p174, %p175
      %p178 = scmp.ne.s32.totalorder %s163, %s177
      %p179 = scmp.eq.s32.totalorder %s27, 0
      %p180 = por %p178, %p179
      %s181 = ssub.s32 %s21, %s28
      %p182 = scmp.eq.s32.totalorder %s181, 0
      %s184 = sadd.s32 %s183, 1
      %s185 = scalar_select %p182, %s183, %s184
      %p188 = pneg %p182
      %p189 = scmp.eq.s32.totalorder %s21, 1
      %p190 = por %p188, %p189
      %p191 = scmp.ne.s32.totalorder %s183, %s186
      %p192 = scmp.eq.s32.totalorder %s21, 0
      %p193 = por %p191, %p192
      %p194 = scmp.ne.s32.totalorder %s183, %s186
      %p195 = scmp.eq.s32.totalorder %s26, 1
      %p196 = por %p194, %p195
      %p197 = scmp.ne.s32.totalorder %s186, %s187
      %p198 = scmp.eq.s32.totalorder %s26, 0
      %p199 = por %p197, %p198
      %p200 = scmp.ne.s32.totalorder %s186, %s187
      %p201 = scmp.eq.s32.totalorder %s27, 1
      %p202 = por %p200, %p201
      %p204 = scmp.ne.s32.totalorder %s187, %s203
      %p205 = scmp.eq.s32.totalorder %s27, 0
      %p206 = por %p204, %p205
      %p207 = scmp.le.s32.totalorder 1, %s21
      %p208 = scmp.lt.s32.totalorder %s21, 3
      %p209 = pnand %p207, %p208
      %p210 = pneg %p209
      // Predicated region
      $region9: #{tpu_custom_call.1} parent=5 // pred_check
        _
      $region10: #{tpu_custom_call.1} parent=5 // pred_check_branch
        %212 = sbr.rel (%p209) target = $region12
      $region11: #{tpu_custom_call.1} parent=5 // pred_region
        %s213 = ssub.s32 %s21, 1
        // Predicated region
        $region13: #{tpu_custom_call.1} parent=11 // pred_check
          %p214 = pneg %p68
        $region14: #{tpu_custom_call.1} parent=11 // pred_check_branch
          %216 = sbr.rel (%p214) target = $region16
        $region15: #{tpu_custom_call.1} parent=11 // pred_region
          %s218 = ssub.s32 1024, 1024
          %219 = vsyncadd [#allocation6], %s218
          %s220 = sshll.u32 [#allocation5], 4
          %s221 = int_to_ptr.vmem [resolvable:$true] %s220
          %226 = dma.hbm_to_vmem [thread:$0]  %s1, 1024, %s221, [#allocation6], 64, 64, 4
        $region16: #{tpu_custom_call.1} parent=11 // pred_fallthru
          _
        // Predicated region
        $region17: #{tpu_custom_call.1} parent=11 // pred_check
          %p227 = pneg %p89
        $region18: #{tpu_custom_call.1} parent=11 // pred_check_branch
          %229 = sbr.rel (%p227) target = $region20
        $region19: #{tpu_custom_call.1} parent=11 // pred_region
          _
        $region20: #{tpu_custom_call.1} parent=11 // pred_fallthru
          _
        // Predicated region
        $region21: #{tpu_custom_call.1} parent=11 // pred_check
          %p230 = pneg %p110
        $region22: #{tpu_custom_call.1} parent=11 // pred_check_branch
          %232 = sbr.rel (%p230) target = $region24
        $region23: #{tpu_custom_call.1} parent=11 // pred_region
          %s234 = ssub.s32 1024, 1024
          %235 = vsyncadd [#allocation6], %s234
          %s236 = sshll.u32 [#allocation7], 4
          %s237 = int_to_ptr.vmem [resolvable:$true] %s236
          %242 = dma.hbm_to_vmem [thread:$0]  %s3, 1024, %s237, [#allocation6], 64, 64, 4
        $region24: #{tpu_custom_call.1} parent=11 // pred_fallthru
          _
        // Predicated region
        $region25: #{tpu_custom_call.1} parent=11 // pred_check
          %p243 = pneg %p131
        $region26: #{tpu_custom_call.1} parent=11 // pred_check_branch
          %245 = sbr.rel (%p243) target = $region28
        $region27: #{tpu_custom_call.1} parent=11 // pred_region
          _
        $region28: #{tpu_custom_call.1} parent=11 // pred_fallthru
          _
        // Predicated region
        $region29: #{tpu_custom_call.1} parent=11 // pred_check
          %p246 = pneg %p152
        $region30: #{tpu_custom_call.1} parent=11 // pred_check_branch
          %248 = sbr.rel (%p246) target = $region32
        $region31: #{tpu_custom_call.1} parent=11 // pred_region
          %s250 = ssub.s32 1024, 1024
          %251 = vsyncadd [#allocation9], %s250
          %s252 = sshll.u32 [#allocation8], 4
          %s253 = int_to_ptr.vmem [resolvable:$true] %s252
          %258 = dma.hbm_to_vmem [thread:$0]  %s5, 1024, %s253, [#allocation9], 64, 64, 4
        $region32: #{tpu_custom_call.1} parent=11 // pred_fallthru
          _
        // Predicated region
        $region33: #{tpu_custom_call.1} parent=11 // pred_check
          %p259 = pneg %p173
        $region34: #{tpu_custom_call.1} parent=11 // pred_check_branch
          %261 = sbr.rel (%p259) target = $region36
        $region35: #{tpu_custom_call.1} parent=11 // pred_region
          _
        $region36: #{tpu_custom_call.1} parent=11 // pred_fallthru
          _
      $region12: #{tpu_custom_call.1} parent=5 // pred_fallthru
        _
      %p262 = scmp.lt.s32.totalorder %s21, 2
      // Predicated region
      $region37: #{tpu_custom_call.1} parent=5 // pred_check
        %p263 = pneg %p262
      $region38: #{tpu_custom_call.1} parent=5 // pred_check_branch
        %265 = sbr.rel (%p263) target = $region40
      $region39: #{tpu_custom_call.1} parent=5 // pred_region
        // Predicated region
        $region41: #{tpu_custom_call.1} parent=39 // pred_check
          %p266 = pneg %p41
        $region42: #{tpu_custom_call.1} parent=39 // pred_check_branch
          %268 = sbr.rel (%p266) target = $region44
        $region43: #{tpu_custom_call.1} parent=39 // pred_region
          %s269 = sand.u32 %s31, 1
          %s270 = scalar_lea.sflag [#allocation3], %s269
          %s271 = sand.u32 %s31, 1
          %s272 = smul.addr %s271, 8
          %s273 = scalar_lea.vmem [#allocation2], %s272
          %s275 = ssub.s32 128, 128
          %276 = vsyncadd %s270, %s275
          %s277 = smul.addr %s21, 2
          %s278 = smul.addr %s277, 64
          %s279 = scalar_lea.hbm %s0, %s278
          %s280 = sshll.u32 %s273, 4
          %s281 = int_to_ptr.vmem [resolvable:$true] %s280
          %286 = dma.hbm_to_vmem [thread:$0]  %s279, 128, %s281, %s270, 64, 64, 4
        $region44: #{tpu_custom_call.1} parent=39 // pred_fallthru
          _
      $region40: #{tpu_custom_call.1} parent=5 // pred_fallthru
        _
      %p287 = scmp.le.s32.totalorder 1, %s21
      %p288 = scmp.lt.s32.totalorder %s21, 3
      %p289 = pnand %p287, %p288
      %p290 = pneg %p289
      // Predicated region
      $region45: #{tpu_custom_call.1} parent=5 // pred_check
        _
      $region46: #{tpu_custom_call.1} parent=5 // pred_check_branch
        %292 = sbr.rel (%p289) target = $region48
      $region47: #{tpu_custom_call.1} parent=5 // pred_region
        %s293 = ssub.s32 %s21, 1
        %s294 = sand.u32 %s34, 1
        %s295 = scalar_lea.sflag [#allocation3], %s294
        %s296 = sand.u32 %s34, 1
        %s297 = smul.addr %s296, 8
        %s298 = scalar_lea.vmem [#allocation2], %s297
        // Predicated region
        $region49: #{tpu_custom_call.1} parent=47 // pred_check
          %p299 = pneg %p47
        $region50: #{tpu_custom_call.1} parent=47 // pred_check_branch
          %301 = sbr.rel (%p299) target = $region52
        $region51: #{tpu_custom_call.1} parent=47 // pred_region
          %302 = dma.done %s295, 128
        $region52: #{tpu_custom_call.1} parent=47 // pred_fallthru
          _
        // Predicated region
        $region53: #{tpu_custom_call.1} parent=47 // pred_check
          %p303 = pneg %p68
        $region54: #{tpu_custom_call.1} parent=47 // pred_check_branch
          %305 = sbr.rel (%p303) target = $region56
        $region55: #{tpu_custom_call.1} parent=47 // pred_region
          %306 = dma.done [#allocation6], 1024
        $region56: #{tpu_custom_call.1} parent=47 // pred_fallthru
          _
        // Predicated region
        $region57: #{tpu_custom_call.1} parent=47 // pred_check
          %p307 = pneg %p110
        $region58: #{tpu_custom_call.1} parent=47 // pred_check_branch
          %309 = sbr.rel (%p307) target = $region60
        $region59: #{tpu_custom_call.1} parent=47 // pred_region
          %310 = dma.done [#allocation6], 1024
        $region60: #{tpu_custom_call.1} parent=47 // pred_fallthru
          _
        // Predicated region
        $region61: #{tpu_custom_call.1} parent=47 // pred_check
          %p311 = pneg %p152
        $region62: #{tpu_custom_call.1} parent=47 // pred_check_branch
          %313 = sbr.rel (%p311) target = $region64
        $region63: #{tpu_custom_call.1} parent=47 // pred_region
          %314 = dma.done [#allocation9], 1024
        $region64: #{tpu_custom_call.1} parent=47 // pred_fallthru
          _
        %s315 = sand.u32 %s34, 1
        %s316 = scalar_lea.sflag [#allocation3], %s315
        %s317 = sand.u32 %s34, 1
        %s318 = smul.addr %s317, 8
        %s319 = scalar_lea.vmem [#allocation2], %s318
        %p320 = pneg %p47
        %p321 = pneg %p44
        %p322 = pneg %p68
        %p323 = pneg %p65
        %p324 = pneg %p89
        %p325 = pneg %p86
        %p326 = pneg %p110
        %p327 = pneg %p107
        %p328 = pneg %p131
        %p329 = pneg %p128
        %p330 = pneg %p152
        %p331 = pneg %p149
        %p332 = pneg %p173
        %p333 = pneg %p170
        %p334 = pneg %p199
        %p335 = pneg %p196
        %s336 = sand.u32 %s186, 1
        %s337 = scalar_lea.sflag [#allocation4], %s336
        %s338 = sand.u32 %s186, 1
        %s339 = smul.addr %s338, 16
        %s340 = scalar_lea.vmem [#allocation10], %s339
        %v342 = vld [vmem:[%s298] sm:$0xf]
        %v343 = vld [vmem:[%s298 + $0x4] sm:$0xf]
        %v344 = vld [vmem:[#allocation7] sm:$0xf]
        %v345 = vld [vmem:[#allocation7 + $0x4] sm:$0xf]
        %v346 = vld [vmem:[#allocation7 + $0x8] sm:$0xf]
        %v347 = vld [vmem:[#allocation7 + $0xc] sm:$0xf]
        %v348 = vld [vmem:[#allocation7 + $0x10] sm:$0xf]
        %v349 = vld [vmem:[#allocation7 + $0x14] sm:$0xf]
        %v350 = vld [vmem:[#allocation7 + $0x18] sm:$0xf]
        %v351 = vld [vmem:[#allocation7 + $0x1c] sm:$0xf]
        %v352 = vld [vmem:[#allocation7 + $0x20] sm:$0xf]
        %v353 = vld [vmem:[#allocation7 + $0x24] sm:$0xf]
        %v354 = vld [vmem:[#allocation7 + $0x28] sm:$0xf]
        %v355 = vld [vmem:[#allocation7 + $0x2c] sm:$0xf]
        %v356 = vld [vmem:[#allocation7 + $0x30] sm:$0xf]
        %v357 = vld [vmem:[#allocation7 + $0x34] sm:$0xf]
        %v358 = vld [vmem:[#allocation7 + $0x38] sm:$0xf]
        %v359 = vld [vmem:[#allocation7 + $0x3c] sm:$0xf]
        %v360 = vld [vmem:[%s4] sm:$0x1]
        %v362 = vlaneseq
        %v363 = vshrl.u32 %v362, 7
        %v364 = vsub.s32 0, %v363
        %v365 = vrot.slane %v360, %v364
        %v369 = vunpack.c.l.b16 %v342
        %v370 = vunpack.c.l.b16 %v343
        %v371 = vpack.c.b16 %v370, %v369
        %v389 = vunpack.c.l.b16 %v344
        %v390 = vunpack.c.l.b16 %v345
        %v391 = vunpack.c.l.b16 %v346
        %v392 = vunpack.c.l.b16 %v347
        %v393 = vunpack.c.l.b16 %v348
        %v394 = vunpack.c.l.b16 %v349
        %v395 = vunpack.c.l.b16 %v350
        %v396 = vunpack.c.l.b16 %v351
        %v397 = vunpack.c.l.b16 %v352
        %v398 = vunpack.c.l.b16 %v353
        %v399 = vunpack.c.l.b16 %v354
        %v400 = vunpack.c.l.b16 %v355
        %v401 = vunpack.c.l.b16 %v356
        %v402 = vunpack.c.l.b16 %v357
        %v403 = vunpack.c.l.b16 %v358
        %v404 = vunpack.c.l.b16 %v359
        %v405 = vpack.c.b16 %v390, %v389
        %v406 = vpack.c.b16 %v392, %v391
        %v407 = vpack.c.b16 %v394, %v393
        %v408 = vpack.c.b16 %v396, %v395
        %v409 = vpack.c.b16 %v398, %v397
        %v410 = vpack.c.b16 %v400, %v399
        %v411 = vpack.c.b16 %v402, %v401
        %v412 = vpack.c.b16 %v404, %v403
        %421 = vmatprep.subr.bf16.mxu0 0
        %422 = vmatpush1.bf16.msra.mxu0 %v405
        %423 = vmatprep.subr.bf16.mxu0 0
        %424 = vmatpush1.bf16.msra.mxu0 %v406
        %425 = vmatprep.subr.bf16.mxu0 0
        %426 = vmatpush1.bf16.msra.mxu0 %v407
        %427 = vmatprep.subr.bf16.mxu0 0
        %428 = vmatpush1.bf16.msra.mxu0 %v408
        %429 = vmatprep.subr.bf16.mxu0 0
        %430 = vmatpush1.bf16.msra.mxu0 %v409
        %431 = vmatprep.subr.bf16.mxu0 0
        %432 = vmatpush1.bf16.msra.mxu0 %v410
        %433 = vmatprep.subr.bf16.mxu0 0
        %434 = vmatpush1.bf16.msra.mxu0 %v411
        %435 = vmatprep.subr.bf16.mxu0 0
        %436 = vmatpush1.bf16.msra.mxu0 %v412
        %437 = vmatprep.subr.bf16.mxu0 0
        %438 = vmatpush1.bf16.msra.mxu0 0
        %439 = vmatprep.subr.bf16.mxu0 0
        %440 = vmatpush1.bf16.msra.mxu0 0
        %441 = vmatprep.subr.bf16.mxu0 0
        %442 = vmatpush1.bf16.msra.mxu0 0
        %443 = vmatprep.subr.bf16.mxu0 0
        %444 = vmatpush1.bf16.msra.mxu0 0
        %445 = vmatprep.subr.bf16.mxu0 0
        %446 = vmatpush1.bf16.msra.mxu0 0
        %447 = vmatprep.subr.bf16.mxu0 0
        %448 = vmatpush1.bf16.msra.mxu0 0
        %449 = vmatprep.subr.bf16.mxu0 0
        %450 = vmatpush1.bf16.msra.mxu0 0
        %451 = vmatprep.subr.bf16.mxu0 0
        %452 = vmatpush1.bf16.msra.mxu0 0
        %453 = vmatprep.mubr.bf16.mxu0 0
        %454 = vmatmul.mubr.bf16.gmra.mrb[0].mxu0 %v371
        %v455 = vpop.f32.mrb[0].mxu0
        %v456 = vadd.f32 %v365, %v455
        %v457 = vpop.f32.mrb[0].mxu0
        %v458 = vpop.f32.mrb[0].mxu0
        %v459 = vadd.f32 %v365, %v458
        %v460 = vpop.f32.mrb[0].mxu0
        %461 = vdwg.mxu0
        %v462 = vmul.f32 %v456, 0.01
        %v463 = vmul.f32 %v459, 0.01
        %v464 = vmax.f32 %v456, %v462
        %v465 = vmax.f32 %v459, %v463
        %v466 = vpack.c.bf16 %v465, %v464
        %v467 = vld [vmem:[#allocation8] sm:$0xf]
        %v468 = vld [vmem:[#allocation8 + $0x4] sm:$0xf]
        %v469 = vld [vmem:[#allocation8 + $0x8] sm:$0xf]
        %v470 = vld [vmem:[#allocation8 + $0xc] sm:$0xf]
        %v471 = vld [vmem:[#allocation8 + $0x10] sm:$0xf]
        %v472 = vld [vmem:[#allocation8 + $0x14] sm:$0xf]
        %v473 = vld [vmem:[#allocation8 + $0x18] sm:$0xf]
        %v474 = vld [vmem:[#allocation8 + $0x1c] sm:$0xf]
        %v475 = vld [vmem:[#allocation8 + $0x20] sm:$0xf]
        %v476 = vld [vmem:[#allocation8 + $0x24] sm:$0xf]
        %v477 = vld [vmem:[#allocation8 + $0x28] sm:$0xf]
        %v478 = vld [vmem:[#allocation8 + $0x2c] sm:$0xf]
        %v479 = vld [vmem:[#allocation8 + $0x30] sm:$0xf]
        %v480 = vld [vmem:[#allocation8 + $0x34] sm:$0xf]
        %v481 = vld [vmem:[#allocation8 + $0x38] sm:$0xf]
        %v482 = vld [vmem:[#allocation8 + $0x3c] sm:$0xf]
        %v483 = vld [vmem:[%s6] sm:$0x1]
        %v485 = vlaneseq
        %v486 = vshrl.u32 %v485, 7
        %v487 = vsub.s32 0, %v486
        %v488 = vrot.slane %v483, %v487
        %v506 = vunpack.c.l.b16 %v467
        %v507 = vunpack.c.l.b16 %v468
        %v508 = vunpack.c.l.b16 %v469
        %v509 = vunpack.c.l.b16 %v470
        %v510 = vunpack.c.l.b16 %v471
        %v511 = vunpack.c.l.b16 %v472
        %v512 = vunpack.c.l.b16 %v473
        %v513 = vunpack.c.l.b16 %v474
        %v514 = vunpack.c.l.b16 %v475
        %v515 = vunpack.c.l.b16 %v476
        %v516 = vunpack.c.l.b16 %v477
        %v517 = vunpack.c.l.b16 %v478
        %v518 = vunpack.c.l.b16 %v479
        %v519 = vunpack.c.l.b16 %v480
        %v520 = vunpack.c.l.b16 %v481
        %v521 = vunpack.c.l.b16 %v482
        %v522 = vpack.c.b16 %v507, %v506
        %v523 = vpack.c.b16 %v509, %v508
        %v524 = vpack.c.b16 %v511, %v510
        %v525 = vpack.c.b16 %v513, %v512
        %v526 = vpack.c.b16 %v515, %v514
        %v527 = vpack.c.b16 %v517, %v516
        %v528 = vpack.c.b16 %v519, %v518
        %v529 = vpack.c.b16 %v521, %v520
        %538 = vmatprep.subr.bf16.mxu0 0
        %539 = vmatpush1.bf16.msra.mxu0 %v522
        %540 = vmatprep.subr.bf16.mxu0 0
        %541 = vmatpush1.bf16.msra.mxu0 %v523
        %542 = vmatprep.subr.bf16.mxu0 0
        %543 = vmatpush1.bf16.msra.mxu0 %v524
        %544 = vmatprep.subr.bf16.mxu0 0
        %545 = vmatpush1.bf16.msra.mxu0 %v525
        %546 = vmatprep.subr.bf16.mxu0 0
        %547 = vmatpush1.bf16.msra.mxu0 %v526
        %548 = vmatprep.subr.bf16.mxu0 0
        %549 = vmatpush1.bf16.msra.mxu0 %v527
        %550 = vmatprep.subr.bf16.mxu0 0
        %551 = vmatpush1.bf16.msra.mxu0 %v528
        %552 = vmatprep.subr.bf16.mxu0 0
        %553 = vmatpush1.bf16.msra.mxu0 %v529
        %554 = vmatprep.subr.bf16.mxu0 0
        %555 = vmatpush1.bf16.msra.mxu0 0
        %556 = vmatprep.subr.bf16.mxu0 0
        %557 = vmatpush1.bf16.msra.mxu0 0
        %558 = vmatprep.subr.bf16.mxu0 0
        %559 = vmatpush1.bf16.msra.mxu0 0
        %560 = vmatprep.subr.bf16.mxu0 0
        %561 = vmatpush1.bf16.msra.mxu0 0
        %562 = vmatprep.subr.bf16.mxu0 0
        %563 = vmatpush1.bf16.msra.mxu0 0
        %564 = vmatprep.subr.bf16.mxu0 0
        %565 = vmatpush1.bf16.msra.mxu0 0
        %566 = vmatprep.subr.bf16.mxu0 0
        %567 = vmatpush1.bf16.msra.mxu0 0
        %568 = vmatprep.subr.bf16.mxu0 0
        %569 = vmatpush1.bf16.msra.mxu0 0
        %570 = vmatprep.mubr.bf16.mxu0 0
        %571 = vmatmul.mubr.bf16.gmra.mrb[0].mxu0 %v466
        %v572 = vpop.f32.mrb[0].mxu0
        %v573 = vadd.f32 %v488, %v572
        %v574 = vpop.f32.mrb[0].mxu0
        %v575 = vpop.f32.mrb[0].mxu0
        %v576 = vadd.f32 %v488, %v575
        %v577 = vpop.f32.mrb[0].mxu0
        %578 = vdwg.mxu0
        %v579 = vpack.c.bf16 %v576, %v573
        %v580 = vld [vmem:[#allocation5] sm:$0xf]
        %v581 = vld [vmem:[#allocation5 + $0x4] sm:$0xf]
        %v582 = vld [vmem:[#allocation5 + $0x8] sm:$0xf]
        %v583 = vld [vmem:[#allocation5 + $0xc] sm:$0xf]
        %v584 = vld [vmem:[#allocation5 + $0x10] sm:$0xf]
        %v585 = vld [vmem:[#allocation5 + $0x14] sm:$0xf]
        %v586 = vld [vmem:[#allocation5 + $0x18] sm:$0xf]
        %v587 = vld [vmem:[#allocation5 + $0x1c] sm:$0xf]
        %v588 = vld [vmem:[#allocation5 + $0x20] sm:$0xf]
        %v589 = vld [vmem:[#allocation5 + $0x24] sm:$0xf]
        %v590 = vld [vmem:[#allocation5 + $0x28] sm:$0xf]
        %v591 = vld [vmem:[#allocation5 + $0x2c] sm:$0xf]
        %v592 = vld [vmem:[#allocation5 + $0x30] sm:$0xf]
        %v593 = vld [vmem:[#allocation5 + $0x34] sm:$0xf]
        %v594 = vld [vmem:[#allocation5 + $0x38] sm:$0xf]
        %v595 = vld [vmem:[#allocation5 + $0x3c] sm:$0xf]
        %v596 = vld [vmem:[%s2] sm:$0x1]
        %v598 = vlaneseq
        %v599 = vshrl.u32 %v598, 7
        %v600 = vsub.s32 0, %v599
        %v601 = vrot.slane %v596, %v600
        %v619 = vunpack.c.l.b16 %v580
        %v620 = vunpack.c.l.b16 %v581
        %v621 = vunpack.c.l.b16 %v582
        %v622 = vunpack.c.l.b16 %v583
        %v623 = vunpack.c.l.b16 %v584
        %v624 = vunpack.c.l.b16 %v585
        %v625 = vunpack.c.l.b16 %v586
        %v626 = vunpack.c.l.b16 %v587
        %v627 = vunpack.c.l.b16 %v588
        %v628 = vunpack.c.l.b16 %v589
        %v629 = vunpack.c.l.b16 %v590
        %v630 = vunpack.c.l.b16 %v591
        %v631 = vunpack.c.l.b16 %v592
        %v632 = vunpack.c.l.b16 %v593
        %v633 = vunpack.c.l.b16 %v594
        %v634 = vunpack.c.l.b16 %v595
        %v635 = vpack.c.b16 %v620, %v619
        %v636 = vpack.c.b16 %v622, %v621
        %v637 = vpack.c.b16 %v624, %v623
        %v638 = vpack.c.b16 %v626, %v625
        %v639 = vpack.c.b16 %v628, %v627
        %v640 = vpack.c.b16 %v630, %v629
        %v641 = vpack.c.b16 %v632, %v631
        %v642 = vpack.c.b16 %v634, %v633
        %651 = vmatprep.subr.bf16.mxu0 0
        %652 = vmatpush1.bf16.msra.mxu0 %v635
        %653 = vmatprep.subr.bf16.mxu0 0
        %654 = vmatpush1.bf16.msra.mxu0 %v636
        %655 = vmatprep.subr.bf16.mxu0 0
        %656 = vmatpush1.bf16.msra.mxu0 %v637
        %657 = vmatprep.subr.bf16.mxu0 0
        %658 = vmatpush1.bf16.msra.mxu0 %v638
        %659 = vmatprep.subr.bf16.mxu0 0
        %660 = vmatpush1.bf16.msra.mxu0 %v639
        %661 = vmatprep.subr.bf16.mxu0 0
        %662 = vmatpush1.bf16.msra.mxu0 %v640
        %663 = vmatprep.subr.bf16.mxu0 0
        %664 = vmatpush1.bf16.msra.mxu0 %v641
        %665 = vmatprep.subr.bf16.mxu0 0
        %666 = vmatpush1.bf16.msra.mxu0 %v642
        %667 = vmatprep.subr.bf16.mxu0 0
        %668 = vmatpush1.bf16.msra.mxu0 0
        %669 = vmatprep.subr.bf16.mxu0 0
        %670 = vmatpush1.bf16.msra.mxu0 0
        %671 = vmatprep.subr.bf16.mxu0 0
        %672 = vmatpush1.bf16.msra.mxu0 0
        %673 = vmatprep.subr.bf16.mxu0 0
        %674 = vmatpush1.bf16.msra.mxu0 0
        %675 = vmatprep.subr.bf16.mxu0 0
        %676 = vmatpush1.bf16.msra.mxu0 0
        %677 = vmatprep.subr.bf16.mxu0 0
        %678 = vmatpush1.bf16.msra.mxu0 0
        %679 = vmatprep.subr.bf16.mxu0 0
        %680 = vmatpush1.bf16.msra.mxu0 0
        %681 = vmatprep.subr.bf16.mxu0 0
        %682 = vmatpush1.bf16.msra.mxu0 0
        %683 = vmatprep.mubr.bf16.mxu0 0
        %684 = vmatmul.mubr.bf16.gmra.mrb[0].mxu0 %v371
        %v685 = vpop.f32.mrb[0].mxu0
        %v686 = vadd.f32 %v601, %v685
        %v687 = vpop.f32.mrb[0].mxu0
        %v688 = vpop.f32.mrb[0].mxu0
        %v689 = vadd.f32 %v601, %v688
        %v690 = vpop.f32.mrb[0].mxu0
        %691 = vdwg.mxu0
        %v692 = vmul.f32 %v686, 0.01
        %v693 = vmul.f32 %v689, 0.01
        %v694 = vmax.f32 %v686, %v692
        %v695 = vmax.f32 %v689, %v693
        %v696 = vpack.c.bf16 %v695, %v694
        %697 = vmatprep.subr.bf16.mxu0 0
        %698 = vmatpush1.bf16.xpose.msra.mxu0 %v696
        %699 = vmatprep.subr.bf16.mxu0 0
        %700 = vmatpush1.bf16.xpose.msra.mxu0 0
        %701 = vmatprep.subr.bf16.mxu0 0
        %702 = vmatpush1.bf16.xpose.msra.mxu0 0
        %703 = vmatprep.subr.bf16.mxu0 0
        %704 = vmatpush1.bf16.xpose.msra.mxu0 0
        %705 = vmatprep.subr.bf16.mxu0 0
        %706 = vmatpush1.bf16.xpose.msra.mxu0 0
        %707 = vmatprep.subr.bf16.mxu0 0
        %708 = vmatpush1.bf16.xpose.msra.mxu0 0
        %709 = vmatprep.subr.bf16.mxu0 0
        %710 = vmatpush1.bf16.xpose.msra.mxu0 0
        %711 = vmatprep.subr.bf16.mxu0 0
        %712 = vmatpush1.bf16.xpose.msra.mxu0 0
        %713 = vmatprep.subr.bf16.mxu0 0
        %714 = vmatpush1.bf16.xpose.msra.mxu0 0
        %715 = vmatprep.subr.bf16.mxu0 0
        %716 = vmatpush1.bf16.xpose.msra.mxu0 0
        %717 = vmatprep.subr.bf16.mxu0 0
        %718 = vmatpush1.bf16.xpose.msra.mxu0 0
        %719 = vmatprep.subr.bf16.mxu0 0
        %720 = vmatpush1.bf16.xpose.msra.mxu0 0
        %721 = vmatprep.subr.bf16.mxu0 0
        %722 = vmatpush1.bf16.xpose.msra.mxu0 0
        %723 = vmatprep.subr.bf16.mxu0 0
        %724 = vmatpush1.bf16.xpose.msra.mxu0 0
        %725 = vmatprep.subr.bf16.mxu0 0
        %726 = vmatpush1.bf16.xpose.msra.mxu0 0
        %727 = vmatprep.subr.bf16.mxu0 0
        %728 = vmatpush1.bf16.xpose.msra.mxu0 0
        %729 = vmatprep.mubr.bf16.mxu0 0
        %730 = vmatmul.mubr.bf16.gmra.mrb[0].mxu0 %v579
        %v731 = vpop.f32.mrb[0].mxu0
        %v732 = vadd.f32 0.0, %v731
        %v733 = vpop.f32.mrb[0].mxu0
        %v734 = vpop.f32.mrb[0].mxu0
        %v735 = vadd.f32 0.0, %v734
        %v736 = vpop.f32.mrb[0].mxu0
        %737 = vdwg.mxu0
        %vm738 = vcmask 130048
        %739 = vst.msk [vmem:[%s340] sm:$0xff] %vm738, %v732
        %740 = vst.msk [vmem:[%s340 + $0x8] sm:$0xff] %vm738, %v735
        %s741 = sand.u32 %s186, 1
        %s742 = scalar_lea.sflag [#allocation4], %s741
        %s743 = sand.u32 %s186, 1
        %s744 = smul.addr %s743, 16
        %s745 = scalar_lea.vmem [#allocation10], %s744
        // Predicated region
        $region65: #{tpu_custom_call.1} parent=47 // pred_check
          %p746 = pneg %p196
        $region66: #{tpu_custom_call.1} parent=47 // pred_check_branch
          %748 = sbr.rel (%p746) target = $region68
        $region67: #{tpu_custom_call.1} parent=47 // pred_region
          %s750 = ssub.s32 256, 256
          %751 = vsyncadd %s742, %s750
          %s752 = smul.addr %s26, 2
          %s753 = smul.addr %s752, 128
          %s754 = scalar_lea.hbm %s7, %s753
          %s755 = sshll.u32 %s745, 4
          %s756 = int_to_ptr.vmem [resolvable:$true] %s755
          %761 = dma.vmem_to_hbm [thread:$0]  %s756, 256, %s754, %s742, 128, 128, 8
        $region68: #{tpu_custom_call.1} parent=47 // pred_fallthru
          _
      $region48: #{tpu_custom_call.1} parent=5 // pred_fallthru
        _
      %p762 = scmp.le.s32.totalorder 2, %s21
      // Predicated region
      $region69: #{tpu_custom_call.1} parent=5 // pred_check
        %p763 = pneg %p762
      $region70: #{tpu_custom_call.1} parent=5 // pred_check_branch
        %765 = sbr.rel (%p763) target = $region72
      $region71: #{tpu_custom_call.1} parent=5 // pred_region
        %s766 = ssub.s32 %s21, 2
        // Predicated region
        $region73: #{tpu_custom_call.1} parent=71 // pred_check
          %p767 = pneg %p202
        $region74: #{tpu_custom_call.1} parent=71 // pred_check_branch
          %769 = sbr.rel (%p767) target = $region76
        $region75: #{tpu_custom_call.1} parent=71 // pred_region
          %s770 = sand.u32 %s187, 1
          %s771 = scalar_lea.sflag [#allocation4], %s770
          %s772 = sand.u32 %s187, 1
          %s773 = smul.addr %s772, 16
          %s774 = scalar_lea.vmem [#allocation10], %s773
          %775 = dma.done %s771, 256
        $region76: #{tpu_custom_call.1} parent=71 // pred_fallthru
          _
      $region72: #{tpu_custom_call.1} parent=5 // pred_fallthru
        _
    $region6: #{tpu_custom_call.1} parent=1 // loop_footer
      %s25 = sadd.s32 1, %s21
    $region7: #{tpu_custom_call.1} parent=1 // loop_footer_branch
      %20 = sbr.rel target = $region3
    $region8: #{tpu_custom_call.1} parent=1 // loop_exit
      _
    %776 = vsyncpa [#allocation3], 1
    %s777 = scalar_lea.sflag [#allocation3], 1
    %778 = vsyncpa %s777, 1
    %779 = vsyncpa [#allocation6], 1
    %780 = vsyncpa [#allocation9], 1
    %781 = vsyncpa [#allocation4], 1
    %s782 = scalar_lea.sflag [#allocation4], 1
    %783 = vsyncpa %s782, 1

// kernel: tpu_custom_call.1
$region0: #{tpu_custom_call.1}
  #allocation0 [shape = 'u32[]', space=smem, size = 0x4, offset = 0x4, fixed_abs, tag = 'smem constant byte address 0x4 - core index']
  #allocation1 [shape = 'u32[144,128]{1,0:T(1,128)}', space=vmem, size = 0x12000, scoped, tag = 'internal scratch']
  %s0 = inlined_call_operand.hbm [shape: bf16[2,16,128], index: 0, kind: input, shape index: {}]
  %s1 = inlined_call_operand.hbm [shape: bf16[128,128], index: 1, kind: input, shape index: {}]
  %s2 = inlined_call_operand.vmem [shape: f32[1,128], index: 2, kind: input, shape index: {}]
  %s3 = inlined_call_operand.hbm [shape: bf16[128,128], index: 3, kind: input, shape index: {}]
  %s4 = inlined_call_operand.vmem [shape: f32[1,128], index: 4, kind: input, shape index: {}]
  %s5 = inlined_call_operand.hbm [shape: bf16[128,128], index: 5, kind: input, shape index: {}]
  %s6 = inlined_call_operand.vmem [shape: f32[1,128], index: 6, kind: input, shape index: {}]
  %s7 = inlined_call_operand.hbm [shape: f32[2,16,16], index: 7, kind: output, shape index: {}]
  %s8 = sld [smem:[#allocation0]]
  $region77: #{tpu_custom_call.1} parent=0
    _
  %s10 = ssub.s32 1, %s8
  %s11 = scalar_select 0, %s10, %s8
  $region1: #{tpu_custom_call.1} parent=0
    #allocation2 [shape = 'u8[8192]{0}', space=vmem, size = 0x2000, scoped, tag = 'input window, operand 0']
    #allocation3 [shape = 's32[2]{0}', space=sflag, size = 0x8, scoped, tag = 'scoped memory for tpu_custom_call.1']
    #allocation4 [shape = 's32[2]{0}', space=sflag, size = 0x8, scoped, tag = 'scoped memory for tpu_custom_call.1']
    #allocation5 [shape = 'u8[32768]{0}', space=vmem, size = 0x8000, scoped, tag = 'input window, operand 1, single buffered']
    #allocation6 [shape = 's32[1]{0}', space=sflag, size = 0x4, scoped, tag = 'scoped memory for tpu_custom_call.1']
    #allocation7 [shape = 'u8[32768]{0}', space=vmem, size = 0x8000, scoped, tag = 'input window, operand 3, single buffered']
    #allocation8 [shape = 'u8[32768]{0}', space=vmem, size = 0x8000, scoped, tag = 'input window, operand 5, single buffered']
    #allocation9 [shape = 's32[1]{0}', space=sflag, size = 0x4, scoped, tag = 'scoped memory for tpu_custom_call.1']
    #allocation10 [shape = 'u8[16384]{0}', space=vmem, size = 0x4000, scoped, tag = 'output window, operand 0']
    %12 = vsyncpa [#allocation3], 0
    %s13 = scalar_lea.sflag [#allocation3], 1
    %14 = vsyncpa %s13, 0
    %15 = vsyncpa [#allocation6], 0
    %16 = vsyncpa [#allocation9], 0
    %17 = vsyncpa [#allocation4], 0
    %s18 = scalar_lea.sflag [#allocation4], 1
    %19 = vsyncpa %s18, 0
    loop: start=0, step=1, limit=4
    $region2: #{tpu_custom_call.1} parent=1 // loop_pre_header
      _
    $region3: #{tpu_custom_call.1} parent=1 // loop_header
      %s21 = sphi 0, %s25
      %p22 = scmp.ge.s32.totalorder %s21, 4
      %s31 = sphi 0, %s33
      %s34 = sphi 0, %s31
      %s35 = sphi 0, %s34
      %s51 = sphi 0, %s35
      %s55 = sphi 0, %s55
      %s57 = sphi 0, %s55
      %s58 = sphi 0, %s57
      %s72 = sphi 0, %s58
      %s76 = sphi 0, %s76
      %s78 = sphi 0, %s76
      %s79 = sphi 0, %s78
      %s93 = sphi 0, %s79
      %s97 = sphi 0, %s97
      %s99 = sphi 0, %s97
      %s100 = sphi 0, %s99
      %s114 = sphi 0, %s100
      %s118 = sphi 0, %s118
      %s120 = sphi 0, %s118
      %s121 = sphi 0, %s120
      %s135 = sphi 0, %s121
      %s139 = sphi 0, %s139
      %s141 = sphi 0, %s139
      %s142 = sphi 0, %s141
      %s156 = sphi 0, %s142
      %s160 = sphi 0, %s160
      %s162 = sphi 0, %s160
      %s163 = sphi 0, %s162
      %s177 = sphi 0, %s163
      %s183 = sphi 0, %s185
      %s186 = sphi 0, %s183
      %s187 = sphi 0, %s186
      %s203 = sphi 0, %s187
    $region4: #{tpu_custom_call.1} parent=1 // loop_header_branch
      %24 = sbr.rel (%p22) target = $region8
    $region5: #{tpu_custom_call.1} parent=1 // loop_body
      %s26 = ssub.s32 %s21, 1
      %s27 = ssub.s32 %s21, 2
      %s28 = sadd.s32 %s21, 1
      %s29 = ssub.s32 %s21, %s28
      %p30 = scmp.eq.s32.totalorder %s29, 0
      %s32 = sadd.s32 %s31, 1
      %s33 = scalar_select %p30, %s31, %s32
      %p36 = pneg %p30
      %p37 = scmp.eq.s32.totalorder %s21, 1
      %p38 = por %p36, %p37
      %p39 = scmp.ne.s32.totalorder %s31, %s34
      %p40 = scmp.eq.s32.totalorder %s21, 0
      %p41 = por %p39, %p40
      %p42 = scmp.ne.s32.totalorder %s31, %s34
      %p43 = scmp.eq.s32.totalorder %s26, 1
      %p44 = por %p42, %p43
      %p45 = scmp.ne.s32.totalorder %s34, %s35
      %p46 = scmp.eq.s32.totalorder %s26, 0
      %p47 = por %p45, %p46
      %p48 = scmp.ne.s32.totalorder %s34, %s35
      %p49 = scmp.eq.s32.totalorder %s27, 1
      %p50 = por %p48, %p49
      %p52 = scmp.ne.s32.totalorder %s35, %s51
      %p53 = scmp.eq.s32.totalorder %s27, 0
      %p54 = por %p52, %p53
      %s56 = sadd.s32 %s55, 1
      %p59 = scmp.eq.s32.totalorder %s21, 1
      %p60 = scmp.ne.s32.totalorder %s55, %s57
      %p61 = scmp.eq.s32.totalorder %s21, 0
      %p62 = por %p60, %p61
      %p63 = scmp.ne.s32.totalorder %s55, %s57
      %p64 = scmp.eq.s32.totalorder %s26, 1
      %p65 = por %p63, %p64
      %p66 = scmp.ne.s32.totalorder %s57, %s58
      %p67 = scmp.eq.s32.totalorder %s26, 0
      %p68 = por %p66, %p67
      %p69 = scmp.ne.s32.totalorder %s57, %s58
      %p70 = scmp.eq.s32.totalorder %s27, 1
      %p71 = por %p69, %p70
      %p73 = scmp.ne.s32.totalorder %s58, %s72
      %p74 = scmp.eq.s32.totalorder %s27, 0
      %p75 = por %p73, %p74
      %s77 = sadd.s32 %s76, 1
      %p80 = scmp.eq.s32.totalorder %s21, 1
      %p81 = scmp.ne.s32.totalorder %s76, %s78
      %p82 = scmp.eq.s32.totalorder %s21, 0
      %p83 = por %p81, %p82
      %p84 = scmp.ne.s32.totalorder %s76, %s78
      %p85 = scmp.eq.s32.totalorder %s26, 1
      %p86 = por %p84, %p85
      %p87 = scmp.ne.s32.totalorder %s78, %s79
      %p88 = scmp.eq.s32.totalorder %s26, 0
      %p89 = por %p87, %p88
      %p90 = scmp.ne.s32.totalorder %s78, %s79
      %p91 = scmp.eq.s32.totalorder %s27, 1
      %p92 = por %p90, %p91
      %p94 = scmp.ne.s32.totalorder %s79, %s93
      %p95 = scmp.eq.s32.totalorder %s27, 0
      %p96 = por %p94, %p95
      %s98 = sadd.s32 %s97, 1
      %p101 = scmp.eq.s32.totalorder %s21, 1
      %p102 = scmp.ne.s32.totalorder %s97, %s99
      %p103 = scmp.eq.s32.totalorder %s21, 0
      %p104 = por %p102, %p103
      %p105 = scmp.ne.s32.totalorder %s97, %s99
      %p106 = scmp.eq.s32.totalorder %s26, 1
      %p107 = por %p105, %p106
      %p108 = scmp.ne.s32.totalorder %s99, %s100
      %p109 = scmp.eq.s32.totalorder %s26, 0
      %p110 = por %p108, %p109
      %p111 = scmp.ne.s32.totalorder %s99, %s100
      %p112 = scmp.eq.s32.totalorder %s27, 1
      %p113 = por %p111, %p112
      %p115 = scmp.ne.s32.totalorder %s100, %s114
      %p116 = scmp.eq.s32.totalorder %s27, 0
      %p117 = por %p115, %p116
      %s119 = sadd.s32 %s118, 1
      %p122 = scmp.eq.s32.totalorder %s21, 1
      %p123 = scmp.ne.s32.totalorder %s118, %s120
      %p124 = scmp.eq.s32.totalorder %s21, 0
      %p125 = por %p123, %p124
      %p126 = scmp.ne.s32.totalorder %s118, %s120
      %p127 = scmp.eq.s32.totalorder %s26, 1
      %p128 = por %p126, %p127
      %p129 = scmp.ne.s32.totalorder %s120, %s121
      %p130 = scmp.eq.s32.totalorder %s26, 0
      %p131 = por %p129, %p130
      %p132 = scmp.ne.s32.totalorder %s120, %s121
      %p133 = scmp.eq.s32.totalorder %s27, 1
      %p134 = por %p132, %p133
      %p136 = scmp.ne.s32.totalorder %s121, %s135
      %p137 = scmp.eq.s32.totalorder %s27, 0
      %p138 = por %p136, %p137
      %s140 = sadd.s32 %s139, 1
      %p143 = scmp.eq.s32.totalorder %s21, 1
      %p144 = scmp.ne.s32.totalorder %s139, %s141
      %p145 = scmp.eq.s32.totalorder %s21, 0
      %p146 = por %p144, %p145
      %p147 = scmp.ne.s32.totalorder %s139, %s141
      %p148 = scmp.eq.s32.totalorder %s26, 1
      %p149 = por %p147, %p148
      %p150 = scmp.ne.s32.totalorder %s141, %s142
      %p151 = scmp.eq.s32.totalorder %s26, 0
      %p152 = por %p150, %p151
      %p153 = scmp.ne.s32.totalorder %s141, %s142
      %p154 = scmp.eq.s32.totalorder %s27, 1
      %p155 = por %p153, %p154
      %p157 = scmp.ne.s32.totalorder %s142, %s156
      %p158 = scmp.eq.s32.totalorder %s27, 0
      %p159 = por %p157, %p158
      %s161 = sadd.s32 %s160, 1
      %p164 = scmp.eq.s32.totalorder %s21, 1
      %p165 = scmp.ne.s32.totalorder %s160, %s162
      %p166 = scmp.eq.s32.totalorder %s21, 0
      %p167 = por %p165, %p166
      %p168 = scmp.ne.s32.totalorder %s160, %s162
      %p169 = scmp.eq.s32.totalorder %s26, 1
      %p170 = por %p168, %p169
      %p171 = scmp.ne.s32.totalorder %s162, %s163
      %p172 = scmp.eq.s32.totalorder %s26, 0
      %p173 = por %p171, %p172
      %p174 = scmp.ne.s32.totalorder %s162, %s163
      %p175 = scmp.eq.s32.totalorder %s27, 1
      %p176 = por %p174, %p175
      %p178 = scmp.ne.s32.totalorder %s163, %s177
      %p179 = scmp.eq.s32.totalorder %s27, 0
      %p180 = por %p178, %p179
      %s181 = ssub.s32 %s21, %s28
      %p182 = scmp.eq.s32.totalorder %s181, 0
      %s184 = sadd.s32 %s183, 1
      %s185 = scalar_select %p182, %s183, %s184
      %p188 = pneg %p182
      %p189 = scmp.eq.s32.totalorder %s21, 1
      %p190 = por %p188, %p189
      %p191 = scmp.ne.s32.totalorder %s183, %s186
      %p192 = scmp.eq.s32.totalorder %s21, 0
      %p193 = por %p191, %p192
      %p194 = scmp.ne.s32.totalorder %s183, %s186
      %p195 = scmp.eq.s32.totalorder %s26, 1
      %p196 = por %p194, %p195
      %p197 = scmp.ne.s32.totalorder %s186, %s187
      %p198 = scmp.eq.s32.totalorder %s26, 0
      %p199 = por %p197, %p198
      %p200 = scmp.ne.s32.totalorder %s186, %s187
      %p201 = scmp.eq.s32.totalorder %s27, 1
      %p202 = por %p200, %p201
      %p204 = scmp.ne.s32.totalorder %s187, %s203
      %p205 = scmp.eq.s32.totalorder %s27, 0
      %p206 = por %p204, %p205
      %p207 = scmp.le.s32.totalorder 1, %s21
      %p208 = scmp.lt.s32.totalorder %s21, 3
      %p209 = pnand %p207, %p208
      %p210 = pneg %p209
      // Predicated region
      $region9: #{tpu_custom_call.1} parent=5 // pred_check
        _
      $region10: #{tpu_custom_call.1} parent=5 // pred_check_branch
        %212 = sbr.rel (%p209) target = $region12
      $region11: #{tpu_custom_call.1} parent=5 // pred_region
        %s213 = ssub.s32 %s21, 1
        // Predicated region
        $region13: #{tpu_custom_call.1} parent=11 // pred_check
          %p214 = pneg %p68
        $region14: #{tpu_custom_call.1} parent=11 // pred_check_branch
          %216 = sbr.rel (%p214) target = $region16
        $region15: #{tpu_custom_call.1} parent=11 // pred_region
          %s218 = ssub.s32 1024, 1024
          %219 = vsyncadd [#allocation6], %s218
          %s220 = sshll.u32 [#allocation5], 4
          %s221 = int_to_ptr.vmem [resolvable:$true] %s220
          %226 = dma.hbm_to_vmem [thread:$0]  %s1, 1024, %s221, [#allocation6], 64, 64, 4
        $region16: #{tpu_custom_call.1} parent=11 // pred_fallthru
          _
        // Predicated region
        $region17: #{tpu_custom_call.1} parent=11 // pred_check
          %p227 = pneg %p89
        $region18: #{tpu_custom_call.1} parent=11 // pred_check_branch
          %229 = sbr.rel (%p227) target = $region20
        $region19: #{tpu_custom_call.1} parent=11 // pred_region
          _
        $region20: #{tpu_custom_call.1} parent=11 // pred_fallthru
          _
        // Predicated region
        $region21: #{tpu_custom_call.1} parent=11 // pred_check
          %p230 = pneg %p110
        $region22: #{tpu_custom_call.1} parent=11 // pred_check_branch
          %232 = sbr.rel (%p230) target = $region24
        $region23: #{tpu_custom_call.1} parent=11 // pred_region
          %s234 = ssub.s32 1024, 1024
          %235 = vsyncadd [#allocation6], %s234
          %s236 = sshll.u32 [#allocation7], 4
          %s237 = int_to_ptr.vmem [resolvable:$true] %s236
          %242 = dma.hbm_to_vmem [thread:$0]  %s3, 1024, %s237, [#allocation6], 64, 64, 4
        $region24: #{tpu_custom_call.1} parent=11 // pred_fallthru
          _
        // Predicated region
        $region25: #{tpu_custom_call.1} parent=11 // pred_check
          %p243 = pneg %p131
        $region26: #{tpu_custom_call.1} parent=11 // pred_check_branch
          %245 = sbr.rel (%p243) target = $region28
        $region27: #{tpu_custom_call.1} parent=11 // pred_region
          _
        $region28: #{tpu_custom_call.1} parent=11 // pred_fallthru
          _
        // Predicated region
        $region29: #{tpu_custom_call.1} parent=11 // pred_check
          %p246 = pneg %p152
        $region30: #{tpu_custom_call.1} parent=11 // pred_check_branch
          %248 = sbr.rel (%p246) target = $region32
        $region31: #{tpu_custom_call.1} parent=11 // pred_region
          %s250 = ssub.s32 1024, 1024
          %251 = vsyncadd [#allocation9], %s250
          %s252 = sshll.u32 [#allocation8], 4
          %s253 = int_to_ptr.vmem [resolvable:$true] %s252
          %258 = dma.hbm_to_vmem [thread:$0]  %s5, 1024, %s253, [#allocation9], 64, 64, 4
        $region32: #{tpu_custom_call.1} parent=11 // pred_fallthru
          _
        // Predicated region
        $region33: #{tpu_custom_call.1} parent=11 // pred_check
          %p259 = pneg %p173
        $region34: #{tpu_custom_call.1} parent=11 // pred_check_branch
          %261 = sbr.rel (%p259) target = $region36
        $region35: #{tpu_custom_call.1} parent=11 // pred_region
          _
        $region36: #{tpu_custom_call.1} parent=11 // pred_fallthru
          _
      $region12: #{tpu_custom_call.1} parent=5 // pred_fallthru
        _
      %p262 = scmp.lt.s32.totalorder %s21, 2
      // Predicated region
      $region37: #{tpu_custom_call.1} parent=5 // pred_check
        %p263 = pneg %p262
      $region38: #{tpu_custom_call.1} parent=5 // pred_check_branch
        %265 = sbr.rel (%p263) target = $region40
      $region39: #{tpu_custom_call.1} parent=5 // pred_region
        // Predicated region
        $region41: #{tpu_custom_call.1} parent=39 // pred_check
          %p266 = pneg %p41
        $region42: #{tpu_custom_call.1} parent=39 // pred_check_branch
          %268 = sbr.rel (%p266) target = $region44
        $region43: #{tpu_custom_call.1} parent=39 // pred_region
          %s269 = sand.u32 %s31, 1
          %s270 = scalar_lea.sflag [#allocation3], %s269
          %s271 = sand.u32 %s31, 1
          %s272 = smul.addr %s271, 8
          %s273 = scalar_lea.vmem [#allocation2], %s272
          %s275 = ssub.s32 128, 128
          %276 = vsyncadd %s270, %s275
          %s277 = smul.addr %s21, 2
          %s278 = smul.addr %s277, 64
          %s279 = scalar_lea.hbm %s0, %s278
          %s280 = sshll.u32 %s273, 4
          %s281 = int_to_ptr.vmem [resolvable:$true] %s280
          %286 = dma.hbm_to_vmem [thread:$0]  %s279, 128, %s281, %s270, 64, 64, 4
        $region44: #{tpu_custom_call.1} parent=39 // pred_fallthru
          _
      $region40: #{tpu_custom_call.1} parent=5 // pred_fallthru
        _
      %p287 = scmp.le.s32.totalorder 1, %s21
      %p288 = scmp.lt.s32.totalorder %s21, 3
      %p289 = pnand %p287, %p288
      %p290 = pneg %p289
      // Predicated region
      $region45: #{tpu_custom_call.1} parent=5 // pred_check
        _
      $region46: #{tpu_custom_call.1} parent=5 // pred_check_branch
        %292 = sbr.rel (%p289) target = $region48
      $region47: #{tpu_custom_call.1} parent=5 // pred_region
        %s293 = ssub.s32 %s21, 1
        %s294 = sand.u32 %s34, 1
        %s295 = scalar_lea.sflag [#allocation3], %s294
        %s296 = sand.u32 %s34, 1
        %s297 = smul.addr %s296, 8
        %s298 = scalar_lea.vmem [#allocation2], %s297
        // Predicated region
        $region49: #{tpu_custom_call.1} parent=47 // pred_check
          %p299 = pneg %p47
        $region50: #{tpu_custom_call.1} parent=47 // pred_check_branch
          %301 = sbr.rel (%p299) target = $region52
        $region51: #{tpu_custom_call.1} parent=47 // pred_region
          %302 = dma.done %s295, 128
        $region52: #{tpu_custom_call.1} parent=47 // pred_fallthru
          _
        // Predicated region
        $region53: #{tpu_custom_call.1} parent=47 // pred_check
          %p303 = pneg %p68
        $region54: #{tpu_custom_call.1} parent=47 // pred_check_branch
          %305 = sbr.rel (%p303) target = $region56
        $region55: #{tpu_custom_call.1} parent=47 // pred_region
          %306 = dma.done [#allocation6], 1024
        $region56: #{tpu_custom_call.1} parent=47 // pred_fallthru
          _
        // Predicated region
        $region57: #{tpu_custom_call.1} parent=47 // pred_check
          %p307 = pneg %p110
        $region58: #{tpu_custom_call.1} parent=47 // pred_check_branch
          %309 = sbr.rel (%p307) target = $region60
        $region59: #{tpu_custom_call.1} parent=47 // pred_region
          %310 = dma.done [#allocation6], 1024
        $region60: #{tpu_custom_call.1} parent=47 // pred_fallthru
          _
        // Predicated region
        $region61: #{tpu_custom_call.1} parent=47 // pred_check
          %p311 = pneg %p152
        $region62: #{tpu_custom_call.1} parent=47 // pred_check_branch
          %313 = sbr.rel (%p311) target = $region64
        $region63: #{tpu_custom_call.1} parent=47 // pred_region
          %314 = dma.done [#allocation9], 1024
        $region64: #{tpu_custom_call.1} parent=47 // pred_fallthru
          _
        %s315 = sand.u32 %s34, 1
        %s316 = scalar_lea.sflag [#allocation3], %s315
        %s317 = sand.u32 %s34, 1
        %s318 = smul.addr %s317, 8
        %s319 = scalar_lea.vmem [#allocation2], %s318
        %p320 = pneg %p47
        %p321 = pneg %p44
        %p322 = pneg %p68
        %p323 = pneg %p65
        %p324 = pneg %p89
        %p325 = pneg %p86
        %p326 = pneg %p110
        %p327 = pneg %p107
        %p328 = pneg %p131
        %p329 = pneg %p128
        %p330 = pneg %p152
        %p331 = pneg %p149
        %p332 = pneg %p173
        %p333 = pneg %p170
        %p334 = pneg %p199
        %p335 = pneg %p196
        %s336 = sand.u32 %s186, 1
        %s337 = scalar_lea.sflag [#allocation4], %s336
        %s338 = sand.u32 %s186, 1
        %s339 = smul.addr %s338, 16
        %s340 = scalar_lea.vmem [#allocation10], %s339
        %v342 = vld [vmem:[%s298] sm:$0xf]
        %v343 = vld [vmem:[%s298 + $0x4] sm:$0xf]
        %v344 = vld [vmem:[#allocation7] sm:$0xf]
        %v345 = vld [vmem:[#allocation7 + $0x4] sm:$0xf]
        %v346 = vld [vmem:[#allocation7 + $0x8] sm:$0xf]
        %v347 = vld [vmem:[#allocation7 + $0xc] sm:$0xf]
        %v348 = vld [vmem:[#allocation7 + $0x10] sm:$0xf]
        %v349 = vld [vmem:[#allocation7 + $0x14] sm:$0xf]
        %v350 = vld [vmem:[#allocation7 + $0x18] sm:$0xf]
        %v351 = vld [vmem:[#allocation7 + $0x1c] sm:$0xf]
        %v352 = vld [vmem:[#allocation7 + $0x20] sm:$0xf]
        %v353 = vld [vmem:[#allocation7 + $0x24] sm:$0xf]
        %v354 = vld [vmem:[#allocation7 + $0x28] sm:$0xf]
        %v355 = vld [vmem:[#allocation7 + $0x2c] sm:$0xf]
        %v356 = vld [vmem:[#allocation7 + $0x30] sm:$0xf]
        %v357 = vld [vmem:[#allocation7 + $0x34] sm:$0xf]
        %v358 = vld [vmem:[#allocation7 + $0x38] sm:$0xf]
        %v359 = vld [vmem:[#allocation7 + $0x3c] sm:$0xf]
        %v360 = vld [vmem:[%s4] sm:$0x1]
        %v362 = vlaneseq
        %v363 = vshrl.u32 %v362, 7
        %v364 = vsub.s32 0, %v363
        %v365 = vrot.slane %v360, %v364
        %v369 = vunpack.c.l.b16 %v342
        %v370 = vunpack.c.l.b16 %v343
        %v371 = vpack.c.b16 %v370, %v369
        %v389 = vunpack.c.l.b16 %v344
        %v390 = vunpack.c.l.b16 %v345
        %v391 = vunpack.c.l.b16 %v346
        %v392 = vunpack.c.l.b16 %v347
        %v393 = vunpack.c.l.b16 %v348
        %v394 = vunpack.c.l.b16 %v349
        %v395 = vunpack.c.l.b16 %v350
        %v396 = vunpack.c.l.b16 %v351
        %v397 = vunpack.c.l.b16 %v352
        %v398 = vunpack.c.l.b16 %v353
        %v399 = vunpack.c.l.b16 %v354
        %v400 = vunpack.c.l.b16 %v355
        %v401 = vunpack.c.l.b16 %v356
        %v402 = vunpack.c.l.b16 %v357
        %v403 = vunpack.c.l.b16 %v358
        %v404 = vunpack.c.l.b16 %v359
        %v405 = vpack.c.b16 %v390, %v389
        %v406 = vpack.c.b16 %v392, %v391
        %v407 = vpack.c.b16 %v394, %v393
        %v408 = vpack.c.b16 %v396, %v395
        %v409 = vpack.c.b16 %v398, %v397
        %v410 = vpack.c.b16 %v400, %v399
        %v411 = vpack.c.b16 %v402, %v401
        %v412 = vpack.c.b16 %v404, %v403
        %421 = vmatprep.subr.bf16.mxu0 0
        %422 = vmatpush1.bf16.msra.mxu0 %v405
        %423 = vmatprep.subr.bf16.mxu0 0
        %424 = vmatpush1.bf16.msra.mxu0 %v406
        %425 = vmatprep.subr.bf16.mxu0 0
        %426 = vmatpush1.bf16.msra.mxu0 %v407
        %427 = vmatprep.subr.bf16.mxu0 0
        %428 = vmatpush1.bf16.msra.mxu0 %v408
        %429 = vmatprep.subr.bf16.mxu0 0
        %430 = vmatpush1.bf16.msra.mxu0 %v409
        %431 = vmatprep.subr.bf16.mxu0 0
        %432 = vmatpush1.bf16.msra.mxu0 %v410
        %433 = vmatprep.subr.bf16.mxu0 0
        %434 = vmatpush1.bf16.msra.mxu0 %v411
        %435 = vmatprep.subr.bf16.mxu0 0
        %436 = vmatpush1.bf16.msra.mxu0 %v412
        %437 = vmatprep.subr.bf16.mxu0 0
        %438 = vmatpush1.bf16.msra.mxu0 0
        %439 = vmatprep.subr.bf16.mxu0 0
        %440 = vmatpush1.bf16.msra.mxu0 0
        %441 = vmatprep.subr.bf16.mxu0 0
        %442 = vmatpush1.bf16.msra.mxu0 0
        %443 = vmatprep.subr.bf16.mxu0 0
        %444 = vmatpush1.bf16.msra.mxu0 0
        %445 = vmatprep.subr.bf16.mxu0 0
        %446 = vmatpush1.bf16.msra.mxu0 0
        %447 = vmatprep.subr.bf16.mxu0 0
        %448 = vmatpush1.bf16.msra.mxu0 0
        %449 = vmatprep.subr.bf16.mxu0 0
        %450 = vmatpush1.bf16.msra.mxu0 0
        %451 = vmatprep.subr.bf16.mxu0 0
        %452 = vmatpush1.bf16.msra.mxu0 0
        %453 = vmatprep.mubr.bf16.mxu0 0
        %454 = vmatmul.mubr.bf16.gmra.mrb[0].mxu0 %v371
        %v455 = vpop.f32.mrb[0].mxu0
        %v456 = vadd.f32 %v365, %v455
        %v457 = vpop.f32.mrb[0].mxu0
        %v458 = vpop.f32.mrb[0].mxu0
        %v459 = vadd.f32 %v365, %v458
        %v460 = vpop.f32.mrb[0].mxu0
        %461 = vdwg.mxu0
        %v462 = vmul.f32 %v456, 0.01
        %v463 = vmul.f32 %v459, 0.01
        %v464 = vmax.f32 %v456, %v462
        %v465 = vmax.f32 %v459, %v463
        %v466 = vpack.c.bf16 %v465, %v464
        %v467 = vld [vmem:[#allocation8] sm:$0xf]
        %v468 = vld [vmem:[#allocation8 + $0x4] sm:$0xf]
        %v469 = vld [vmem:[#allocation8 + $0x8] sm:$0xf]
        %v470 = vld [vmem:[#allocation8 + $0xc] sm:$0xf]
        %v471 = vld [vmem:[#allocation8 + $0x10] sm:$0xf]
        %v472 = vld [vmem:[#allocation8 + $0x14] sm:$0xf]
        %v473 = vld [vmem:[#allocation8 + $0x18] sm:$0xf]
        %v474 = vld [vmem:[#allocation8 + $0x1c] sm:$0xf]
        %v475 = vld [vmem:[#allocation8 + $0x20] sm:$0xf]
        %v476 = vld [vmem:[#allocation8 + $0x24] sm:$0xf]
        %v477 = vld [vmem:[#allocation8 + $0x28] sm:$0xf]
        %v478 = vld [vmem:[#allocation8 + $0x2c] sm:$0xf]
        %v479 = vld [vmem:[#allocation8 + $0x30] sm:$0xf]
        %v480 = vld [vmem:[#allocation8 + $0x34] sm:$0xf]
        %v481 = vld [vmem:[#allocation8 + $0x38] sm:$0xf]
        %v482 = vld [vmem:[#allocation8 + $0x3c] sm:$0xf]
        %v483 = vld [vmem:[%s6] sm:$0x1]
        %v485 = vlaneseq
        %v486 = vshrl.u32 %v485, 7
        %v487 = vsub.s32 0, %v486
        %v488 = vrot.slane %v483, %v487
        %v506 = vunpack.c.l.b16 %v467
        %v507 = vunpack.c.l.b16 %v468
        %v508 = vunpack.c.l.b16 %v469
        %v509 = vunpack.c.l.b16 %v470
        %v510 = vunpack.c.l.b16 %v471
        %v511 = vunpack.c.l.b16 %v472
        %v512 = vunpack.c.l.b16 %v473
        %v513 = vunpack.c.l.b16 %v474
        %v514 = vunpack.c.l.b16 %v475
        %v515 = vunpack.c.l.b16 %v476
        %v516 = vunpack.c.l.b16 %v477
        %v517 = vunpack.c.l.b16 %v478
        %v518 = vunpack.c.l.b16 %v479
        %v519 = vunpack.c.l.b16 %v480
        %v520 = vunpack.c.l.b16 %v481
        %v521 = vunpack.c.l.b16 %v482
        %v522 = vpack.c.b16 %v507, %v506
        %v523 = vpack.c.b16 %v509, %v508
        %v524 = vpack.c.b16 %v511, %v510
        %v525 = vpack.c.b16 %v513, %v512
        %v526 = vpack.c.b16 %v515, %v514
        %v527 = vpack.c.b16 %v517, %v516
        %v528 = vpack.c.b16 %v519, %v518
        %v529 = vpack.c.b16 %v521, %v520
        %538 = vmatprep.subr.bf16.mxu0 0
        %539 = vmatpush1.bf16.msra.mxu0 %v522
        %540 = vmatprep.subr.bf16.mxu0 0
        %541 = vmatpush1.bf16.msra.mxu0 %v523
        %542 = vmatprep.subr.bf16.mxu0 0
        %543 = vmatpush1.bf16.msra.mxu0 %v524
        %544 = vmatprep.subr.bf16.mxu0 0
        %545 = vmatpush1.bf16.msra.mxu0 %v525
        %546 = vmatprep.subr.bf16.mxu0 0
        %547 = vmatpush1.bf16.msra.mxu0 %v526
        %548 = vmatprep.subr.bf16.mxu0 0
        %549 = vmatpush1.bf16.msra.mxu0 %v527
        %550 = vmatprep.subr.bf16.mxu0 0
        %551 = vmatpush1.bf16.msra.mxu0 %v528
        %552 = vmatprep.subr.bf16.mxu0 0
        %553 = vmatpush1.bf16.msra.mxu0 %v529
        %554 = vmatprep.subr.bf16.mxu0 0
        %555 = vmatpush1.bf16.msra.mxu0 0
        %556 = vmatprep.subr.bf16.mxu0 0
        %557 = vmatpush1.bf16.msra.mxu0 0
        %558 = vmatprep.subr.bf16.mxu0 0
        %559 = vmatpush1.bf16.msra.mxu0 0
        %560 = vmatprep.subr.bf16.mxu0 0
        %561 = vmatpush1.bf16.msra.mxu0 0
        %562 = vmatprep.subr.bf16.mxu0 0
        %563 = vmatpush1.bf16.msra.mxu0 0
        %564 = vmatprep.subr.bf16.mxu0 0
        %565 = vmatpush1.bf16.msra.mxu0 0
        %566 = vmatprep.subr.bf16.mxu0 0
        %567 = vmatpush1.bf16.msra.mxu0 0
        %568 = vmatprep.subr.bf16.mxu0 0
        %569 = vmatpush1.bf16.msra.mxu0 0
        %570 = vmatprep.mubr.bf16.mxu0 0
        %571 = vmatmul.mubr.bf16.gmra.mrb[0].mxu0 %v466
        %v572 = vpop.f32.mrb[0].mxu0
        %v573 = vadd.f32 %v488, %v572
        %v574 = vpop.f32.mrb[0].mxu0
        %v575 = vpop.f32.mrb[0].mxu0
        %v576 = vadd.f32 %v488, %v575
        %v577 = vpop.f32.mrb[0].mxu0
        %578 = vdwg.mxu0
        %v579 = vpack.c.bf16 %v576, %v573
        %v580 = vld [vmem:[#allocation5] sm:$0xf]
        %v581 = vld [vmem:[#allocation5 + $0x4] sm:$0xf]
        %v582 = vld [vmem:[#allocation5 + $0x8] sm:$0xf]
        %v583 = vld [vmem:[#allocation5 + $0xc] sm:$0xf]
        %v584 = vld [vmem:[#allocation5 + $0x10] sm:$0xf]
        %v585 = vld [vmem:[#allocation5 + $0x14] sm:$0xf]
        %v586 = vld [vmem:[#allocation5 + $0x18] sm:$0xf]
        %v587 = vld [vmem:[#allocation5 + $0x1c] sm:$0xf]
        %v588 = vld [vmem:[#allocation5 + $0x20] sm:$0xf]
        %v589 = vld [vmem:[#allocation5 + $0x24] sm:$0xf]
        %v590 = vld [vmem:[#allocation5 + $0x28] sm:$0xf]
        %v591 = vld [vmem:[#allocation5 + $0x2c] sm:$0xf]
        %v592 = vld [vmem:[#allocation5 + $0x30] sm:$0xf]
        %v593 = vld [vmem:[#allocation5 + $0x34] sm:$0xf]
        %v594 = vld [vmem:[#allocation5 + $0x38] sm:$0xf]
        %v595 = vld [vmem:[#allocation5 + $0x3c] sm:$0xf]
        %v596 = vld [vmem:[%s2] sm:$0x1]
        %v598 = vlaneseq
        %v599 = vshrl.u32 %v598, 7
        %v600 = vsub.s32 0, %v599
        %v601 = vrot.slane %v596, %v600
        %v619 = vunpack.c.l.b16 %v580
        %v620 = vunpack.c.l.b16 %v581
        %v621 = vunpack.c.l.b16 %v582
        %v622 = vunpack.c.l.b16 %v583
        %v623 = vunpack.c.l.b16 %v584
        %v624 = vunpack.c.l.b16 %v585
        %v625 = vunpack.c.l.b16 %v586
        %v626 = vunpack.c.l.b16 %v587
        %v627 = vunpack.c.l.b16 %v588
        %v628 = vunpack.c.l.b16 %v589
        %v629 = vunpack.c.l.b16 %v590
        %v630 = vunpack.c.l.b16 %v591
        %v631 = vunpack.c.l.b16 %v592
        %v632 = vunpack.c.l.b16 %v593
        %v633 = vunpack.c.l.b16 %v594
        %v634 = vunpack.c.l.b16 %v595
        %v635 = vpack.c.b16 %v620, %v619
        %v636 = vpack.c.b16 %v622, %v621
        %v637 = vpack.c.b16 %v624, %v623
        %v638 = vpack.c.b16 %v626, %v625
        %v639 = vpack.c.b16 %v628, %v627
        %v640 = vpack.c.b16 %v630, %v629
        %v641 = vpack.c.b16 %v632, %v631
        %v642 = vpack.c.b16 %v634, %v633
        %651 = vmatprep.subr.bf16.mxu0 0
        %652 = vmatpush1.bf16.msra.mxu0 %v635
        %653 = vmatprep.subr.bf16.mxu0 0
        %654 = vmatpush1.bf16.msra.mxu0 %v636
        %655 = vmatprep.subr.bf16.mxu0 0
        %656 = vmatpush1.bf16.msra.mxu0 %v637
        %657 = vmatprep.subr.bf16.mxu0 0
        %658 = vmatpush1.bf16.msra.mxu0 %v638
        %659 = vmatprep.subr.bf16.mxu0 0
        %660 = vmatpush1.bf16.msra.mxu0 %v639
        %661 = vmatprep.subr.bf16.mxu0 0
        %662 = vmatpush1.bf16.msra.mxu0 %v640
        %663 = vmatprep.subr.bf16.mxu0 0
        %664 = vmatpush1.bf16.msra.mxu0 %v641
        %665 = vmatprep.subr.bf16.mxu0 0
        %666 = vmatpush1.bf16.msra.mxu0 %v642
        %667 = vmatprep.subr.bf16.mxu0 0
        %668 = vmatpush1.bf16.msra.mxu0 0
        %669 = vmatprep.subr.bf16.mxu0 0
        %670 = vmatpush1.bf16.msra.mxu0 0
        %671 = vmatprep.subr.bf16.mxu0 0
        %672 = vmatpush1.bf16.msra.mxu0 0
        %673 = vmatprep.subr.bf16.mxu0 0
        %674 = vmatpush1.bf16.msra.mxu0 0
        %675 = vmatprep.subr.bf16.mxu0 0
        %676 = vmatpush1.bf16.msra.mxu0 0
        %677 = vmatprep.subr.bf16.mxu0 0
        %678 = vmatpush1.bf16.msra.mxu0 0
        %679 = vmatprep.subr.bf16.mxu0 0
        %680 = vmatpush1.bf16.msra.mxu0 0
        %681 = vmatprep.subr.bf16.mxu0 0
        %682 = vmatpush1.bf16.msra.mxu0 0
        %683 = vmatprep.mubr.bf16.mxu0 0
        %684 = vmatmul.mubr.bf16.gmra.mrb[0].mxu0 %v371
        %v685 = vpop.f32.mrb[0].mxu0
        %v686 = vadd.f32 %v601, %v685
        %v687 = vpop.f32.mrb[0].mxu0
        %v688 = vpop.f32.mrb[0].mxu0
        %v689 = vadd.f32 %v601, %v688
        %v690 = vpop.f32.mrb[0].mxu0
        %691 = vdwg.mxu0
        %v692 = vmul.f32 %v686, 0.01
        %v693 = vmul.f32 %v689, 0.01
        %v694 = vmax.f32 %v686, %v692
        %v695 = vmax.f32 %v689, %v693
        %v696 = vpack.c.bf16 %v695, %v694
        %697 = vmatprep.subr.bf16.mxu0 0
        %698 = vmatpush1.bf16.xpose.msra.mxu0 %v696
        %699 = vmatprep.subr.bf16.mxu0 0
        %700 = vmatpush1.bf16.xpose.msra.mxu0 0
        %701 = vmatprep.subr.bf16.mxu0 0
        %702 = vmatpush1.bf16.xpose.msra.mxu0 0
        %703 = vmatprep.subr.bf16.mxu0 0
        %704 = vmatpush1.bf16.xpose.msra.mxu0 0
        %705 = vmatprep.subr.bf16.mxu0 0
        %706 = vmatpush1.bf16.xpose.msra.mxu0 0
        %707 = vmatprep.subr.bf16.mxu0 0
        %708 = vmatpush1.bf16.xpose.msra.mxu0 0
        %709 = vmatprep.subr.bf16.mxu0 0
        %710 = vmatpush1.bf16.xpose.msra.mxu0 0
        %711 = vmatprep.subr.bf16.mxu0 0
        %712 = vmatpush1.bf16.xpose.msra.mxu0 0
        %713 = vmatprep.subr.bf16.mxu0 0
        %714 = vmatpush1.bf16.xpose.msra.mxu0 0
        %715 = vmatprep.subr.bf16.mxu0 0
        %716 = vmatpush1.bf16.xpose.msra.mxu0 0
        %717 = vmatprep.subr.bf16.mxu0 0
        %718 = vmatpush1.bf16.xpose.msra.mxu0 0
        %719 = vmatprep.subr.bf16.mxu0 0
        %720 = vmatpush1.bf16.xpose.msra.mxu0 0
        %721 = vmatprep.subr.bf16.mxu0 0
        %722 = vmatpush1.bf16.xpose.msra.mxu0 0
        %723 = vmatprep.subr.bf16.mxu0 0
        %724 = vmatpush1.bf16.xpose.msra.mxu0 0
        %725 = vmatprep.subr.bf16.mxu0 0
        %726 = vmatpush1.bf16.xpose.msra.mxu0 0
        %727 = vmatprep.subr.bf16.mxu0 0
        %728 = vmatpush1.bf16.xpose.msra.mxu0 0
        %729 = vmatprep.mubr.bf16.mxu0 0
        %730 = vmatmul.mubr.bf16.gmra.mrb[0].mxu0 %v579
        %v731 = vpop.f32.mrb[0].mxu0
        %v732 = vadd.f32 0.0, %v731
        %v733 = vpop.f32.mrb[0].mxu0
        %v734 = vpop.f32.mrb[0].mxu0
        %v735 = vadd.f32 0.0, %v734
        %v736 = vpop.f32.mrb[0].mxu0
        %737 = vdwg.mxu0
        %vm738 = vcmask 130048
        %739 = vst.msk [vmem:[%s340] sm:$0xff] %vm738, %v732
        %740 = vst.msk [vmem:[%s340 + $0x8] sm:$0xff] %vm738, %v735
        %s741 = sand.u32 %s186, 1
        %s742 = scalar_lea.sflag [#allocation4], %s741
        %s743 = sand.u32 %s186, 1
        %s744 = smul.addr %s743, 16
        %s745 = scalar_lea.vmem [#allocation10], %s744
        // Predicated region
        $region65: #{tpu_custom_call.1} parent=47 // pred_check
          %p746 = pneg %p196
        $region66: #{tpu_custom_call.1} parent=47 // pred_check_branch
          %748 = sbr.rel (%p746) target = $region68
        $region67: #{tpu_custom_call.1} parent=47 // pred_region
          %s750 = ssub.s32 256, 256
          %751 = vsyncadd %s742, %s750
          %s752 = smul.addr %s26, 2
          %s753 = smul.addr %s752, 128
          %s754 = scalar_lea.hbm %s7, %s753
          %s755 = sshll.u32 %s745, 4
          %s756 = int_to_ptr.vmem [resolvable:$true] %s755
          %761 = dma.vmem_to_hbm [thread:$0]  %s756, 256, %s754, %s742, 128, 128, 8
        $region68: #{tpu_custom_call.1} parent=47 // pred_fallthru
          _
      $region48: #{tpu_custom_call.1} parent=5 // pred_fallthru
        _
      %p762 = scmp.le.s32.totalorder 2, %s21
      // Predicated region
      $region69: #{tpu_custom_call.1} parent=5 // pred_check
        %p763 = pneg %p762
      $region70: #{tpu_custom_call.1} parent=5 // pred_check_branch
        %765 = sbr.rel (%p763) target = $region72
      $region71: #{tpu_custom_call.1} parent=5 // pred_region
        %s766 = ssub.s32 %s21, 2
        // Predicated region
        $region73: #{tpu_custom_call.1} parent=71 // pred_check
          %p767 = pneg %p202
        $region74: #{tpu_custom_call.1} parent=71 // pred_check_branch
          %769 = sbr.rel (%p767) target = $region76
        $region75: #{tpu_custom_call.1} parent=71 // pred_region
          %s770 = sand.u32 %s187, 1
          %s771 = scalar_lea.sflag [#allocation4], %s770
          %s772 = sand.u32 %s187, 1
          %s773 = smul.addr %s772, 16
          %s774 = scalar_lea.vmem [#allocation10], %s773
          %775 = dma.done %s771, 256
        $region76: #{tpu_custom_call.1} parent=71 // pred_fallthru
          _
      $region72: #{tpu_custom_call.1} parent=5 // pred_fallthru
        _
    $region6: #{tpu_custom_call.1} parent=1 // loop_footer
      %s25 = sadd.s32 1, %s21
    $region7: #{tpu_custom_call.1} parent=1 // loop_footer_branch
      %20 = sbr.rel target = $region3
    $region8: #{tpu_custom_call.1} parent=1 // loop_exit
      _
    %776 = vsyncpa [#allocation3], 1
    %s777 = scalar_lea.sflag [#allocation3], 1
    %778 = vsyncpa %s777, 1
    %779 = vsyncpa [#allocation6], 1
    %780 = vsyncpa [#allocation9], 1
    %781 = vsyncpa [#allocation4], 1
    %s782 = scalar_lea.sflag [#allocation4], 1
    %783 = vsyncpa %s782, 1

</llo_original>
